<compile_context>
chip_gen: v6e
topology: v6e:2x2x1
jax: 0.10.0
libtpu: 0.0.40
codegen_flags: <defaults>
</compile_context>

<pallas_src>
import jax
import jax.numpy as jnp
from jax.experimental import pallas as pl
from jax.experimental.pallas import tpu as pltpu

IN_DIM = 2048 + 256   # 2304
HID_DIM = 64
OUT_DIM = 1


def _round_up(n, m):
    return -(-n // m) * m


def _selector_kernel(x_ref, w1_ref, b1_ref, w2_ref, b2_ref, o_ref):
    # Cast the streamed x tile to bf16 on the VPU (hidden under the DMA) and
    # run fc1 on the MXU with f32 accumulation; bias + ReLU on the VPU.
    x = x_ref[...].astype(jnp.bfloat16)
    h = jnp.dot(x, w1_ref[...], preferred_element_type=jnp.float32)
    h = jnp.maximum(h + b1_ref[...], 0.0)                  # (block_b, 64) f32
    # fc2: VPU multiply + lane reduction (avoids an N=1 MXU matmul).
    o = jnp.sum(h * w2_ref[...], axis=-1, keepdims=True) + b2_ref[...]
    o_ref[...] = o.astype(o_ref.dtype)                     # (block_b, 1)


def selector_forward(x, w1, b1, w2, b2, *, block_b=None, min_pallas_batch=256,
                     force_pallas=False, vmem_limit_bytes=None):
    """x: [B, 2304] (f32 or bf16) -> [B, 1] f32.

    w1: [2304, 64] (fc1.weight pre-transposed), b1: [64],
    w2: [64] (or [1, 64] / [64, 1]), b2: scalar (or [1]).
    """
    B, D = x.shape
    assert D == IN_DIM

    # Weights / small vectors: W1 in bf16 (resident, tiny one-time cast),
    # everything else f32.
    w1 = jnp.asarray(w1).reshape(IN_DIM, HID_DIM).astype(jnp.bfloat16)
    b1 = jnp.asarray(b1, jnp.float32).reshape(1, HID_DIM)
    w2 = jnp.asarray(w2, jnp.float32).reshape(1, HID_DIM)
    b2 = jnp.asarray(b2, jnp.float32).reshape(1, OUT_DIM)

    # Small-batch fallback: pallas_call launch overhead dominates for tiny B.
    if B < min_pallas_batch and not force_pallas:
        xq = x.astype(jnp.bfloat16)
        h = jnp.dot(xq, w1, preferred_element_type=jnp.float32)
        h = jnp.maximum(h + b1, 0.0)
        return jnp.sum(h * w2, axis=-1, keepdims=True) + b2

    # Batch tile: multiple of 8 sublanes, <=2048 rows, and >=2 grid steps
    # when possible (v7x has 2 TensorCores; "parallel" shards the grid).
    if block_b is None:
        block_b = min(2048, _round_up(max(pl.cdiv(B, 2), 8), 8))
    assert block_b % 8 == 0, "block_b must be a multiple of 8"

    grid = (pl.cdiv(B, block_b),)   # partial last tile handled by Pallas

    x_item = jnp.dtype(x.dtype).itemsize
    if vmem_limit_bytes is None:
        need = (2 * block_b * IN_DIM * x_item        # x tile, double-buffered
                + 2 * IN_DIM * HID_DIM * 2           # W1 bf16 (resident)
                + 2 * block_b * OUT_DIM * 4          # output tile
                + 2 * 4 * (2 * HID_DIM + OUT_DIM))   # b1, w2, b2
        # Footprint + fixed headroom; never capped below the actual need.
        vmem_limit_bytes = int(need + (8 << 20))

    cost = pl.CostEstimate(
        flops=2 * B * IN_DIM * HID_DIM + 3 * B * HID_DIM,
        bytes_accessed=(B * IN_DIM * x_item + IN_DIM * HID_DIM * 2
                        + B * OUT_DIM * 4 + 4 * (2 * HID_DIM + OUT_DIM)),
        transcendentals=0,
    )

    out = pl.pallas_call(
        _selector_kernel,
        out_shape=jax.ShapeDtypeStruct((B, OUT_DIM), jnp.float32),
        grid_spec=pltpu.PrefetchScalarGridSpec(
            num_scalar_prefetch=0,
            grid=grid,
            in_specs=[
                pl.BlockSpec((block_b, IN_DIM), lambda i: (i, 0)),   # x tile
                pl.BlockSpec((IN_DIM, HID_DIM), lambda i: (0, 0)),   # W1 resident
                pl.BlockSpec((1, HID_DIM), lambda i: (0, 0)),        # b1
                pl.BlockSpec((1, HID_DIM), lambda i: (0, 0)),        # w2 (row)
                pl.BlockSpec((1, OUT_DIM), lambda i: (0, 0)),        # b2
            ],
            out_specs=pl.BlockSpec((block_b, OUT_DIM), lambda i: (i, 0)),
        ),
        compiler_params=pltpu.CompilerParams(
            dimension_semantics=("parallel",),   # shards grid steps across TCs
            vmem_limit_bytes=vmem_limit_bytes,
        ),
        cost_estimate=cost,
    )(x, w1, b1, w2, b2)

    return out


def _init_params(key):
    """Deterministic synthetic init (shapes match the nn.Linear definitions)."""
    k1, k2, k3, k4 = jax.random.split(key, 4)
    bound1 = 1.0 / (IN_DIM ** 0.5)
    w1 = jax.random.uniform(k1, (IN_DIM, HID_DIM), jnp.float32, -bound1, bound1)
    b1 = jax.random.uniform(k2, (HID_DIM,), jnp.float32, -bound1, bound1)
    bound2 = 1.0 / (HID_DIM ** 0.5)
    w2 = jax.random.uniform(k3, (HID_DIM,), jnp.float32, -bound2, bound2)
    b2 = jax.random.uniform(k4, (), jnp.float32, -bound2, bound2)
    return w1, b1, w2, b2


def _reference(x, w1, b1, w2, b2):
    """Same math / quantization (bf16 x, bf16 W1, f32 accumulation)."""
    xq = x.astype(jnp.bfloat16)
    w1q = jnp.asarray(w1).reshape(IN_DIM, HID_DIM).astype(jnp.bfloat16)
    h = jnp.dot(xq, w1q, preferred_element_type=jnp.float32)
    h = jnp.maximum(h + jnp.reshape(b1, (1, HID_DIM)), 0.0)
    return (jnp.sum(h * jnp.reshape(w2, (1, HID_DIM)), axis=-1, keepdims=True)
            + jnp.reshape(b2, (1, OUT_DIM)))


if __name__ == "__main__":
    key = jax.random.PRNGKey(0)
    kx, kp = jax.random.split(key)
    w1, b1, w2, b2 = _init_params(kp)

    # 1) Small-batch smoke test (dispatches to the jnp fallback path).
    B = 8
    x = jax.random.normal(kx, (B, IN_DIM), dtype=jnp.float32)
    out = jax.block_until_ready(selector_forward(x, w1, b1, w2, b2))
    ref = _reference(x, w1, b1, w2, b2)
    assert out.shape == (B, OUT_DIM)
    assert jnp.allclose(out, ref, atol=1e-2, rtol=1e-2), "mismatch (B=8 fallback)"

    # 2) Pallas path, default tiling: B=272 -> block_b=136, grid of 2 steps.
    B2 = 272
    x2 = jax.random.normal(kx, (B2, IN_DIM), dtype=jnp.float32)
    out2 = jax.block_until_ready(
        selector_forward(x2, w1, b1, w2, b2, force_pallas=True))
    ref2 = _reference(x2, w1, b1, w2, b2)
    assert out2.shape == (B2, OUT_DIM)
    assert jnp.allclose(out2, ref2, atol=1e-2, rtol=1e-2), "mismatch (B=272 default)"

    # 3) Pallas path with an explicit tile that does NOT divide B: exercises
    #    the cdiv grid + partial last tile (3 tiles of 128, last has 16 rows).
    out3 = jax.block_until_ready(
        selector_forward(x2, w1, b1, w2, b2, block_b=128, force_pallas=True))
    assert out3.shape == (B2, OUT_DIM)
    assert jnp.allclose(out3, ref2, atol=1e-2, rtol=1e-2), "mismatch (B=272 remainder)"

    print("KERNEL_OK")
</pallas_src>

<mosaic_0001>
module attributes {stable_mosaic.version = 11 : i64} {
  func.func @_selector_kernel(%arg0: i32, %arg1: memref<136x2304xf32, #tpu.memory_space<vmem>>, %arg2: memref<2304x64xbf16, #tpu.memory_space<vmem>>, %arg3: memref<1x64xf32, #tpu.memory_space<vmem>>, %arg4: memref<1x64xf32, #tpu.memory_space<vmem>>, %arg5: memref<1x1xf32, #tpu.memory_space<vmem>>, %arg6: memref<136x1xf32, #tpu.memory_space<vmem>>) attributes {dimension_semantics = [#tpu.dimension_semantics<parallel>], iteration_bounds = array<i64: 2>, scalar_prefetch = 0 : i64, scratch_operands = 0 : i64, tpu.core_type = #tpu.core_type<tc>, window_params = [{transform_indices = @transform_0, window_bounds = array<i64: 136, 2304>}, {pipeline_mode = #tpu.pipeline_mode<synchronous>, transform_indices = @transform_1, window_bounds = array<i64: 2304, 64>}, {pipeline_mode = #tpu.pipeline_mode<synchronous>, transform_indices = @transform_2, window_bounds = array<i64: 1, 64>}, {pipeline_mode = #tpu.pipeline_mode<synchronous>, transform_indices = @transform_3, window_bounds = array<i64: 1, 64>}, {pipeline_mode = #tpu.pipeline_mode<synchronous>, transform_indices = @transform_4, window_bounds = array<i64: 1, 1>}, {transform_indices = @transform_5, window_bounds = array<i64: 136, 1>}]} {
    %c0 = arith.constant 0 : index
    %c0_0 = arith.constant 0 : index
    %0 = vector.load %arg1[%c0, %c0_0] : memref<136x2304xf32, #tpu.memory_space<vmem>>, vector<136x2304xf32>
    %1 = arith.truncf %0 : vector<136x2304xf32> to vector<136x2304xbf16>
    %c0_1 = arith.constant 0 : index
    %c0_2 = arith.constant 0 : index
    %2 = vector.load %arg2[%c0_1, %c0_2] : memref<2304x64xbf16, #tpu.memory_space<vmem>>, vector<2304x64xbf16>
    %cst = arith.constant dense<0.000000e+00> : vector<136x64xf32>
    %3 = tpu.matmul %1, %2, %cst {dimension_numbers = #tpu.dot_dimension_numbers<[1], [0], [0], [1], [0, 0, 1, 1], [], []>} : vector<136x2304xbf16>, vector<2304x64xbf16>, vector<136x64xf32> -> vector<136x64xf32>
    %c0_3 = arith.constant 0 : index
    %c0_4 = arith.constant 0 : index
    %4 = vector.load %arg3[%c0_3, %c0_4] : memref<1x64xf32, #tpu.memory_space<vmem>>, vector<1x64xf32>
    %5 = vector.broadcast %4 : vector<1x64xf32> to vector<136x64xf32>
    %6 = arith.addf %3, %5 : vector<136x64xf32>
    %cst_5 = arith.constant 0.000000e+00 : f32
    %7 = vector.broadcast %cst_5 : f32 to vector<136x64xf32>
    %8 = arith.maximumf %6, %7 : vector<136x64xf32>
    %c0_6 = arith.constant 0 : index
    %c0_7 = arith.constant 0 : index
    %9 = vector.load %arg4[%c0_6, %c0_7] : memref<1x64xf32, #tpu.memory_space<vmem>>, vector<1x64xf32>
    %10 = vector.broadcast %9 : vector<1x64xf32> to vector<136x64xf32>
    %11 = arith.mulf %8, %10 : vector<136x64xf32>
    %cst_8 = arith.constant dense<0.000000e+00> : vector<136xf32>
    %12 = vector.multi_reduction <add>, %11, %cst_8 [1] : vector<136x64xf32> to vector<136xf32>
    %13 = vector.shape_cast %12 : vector<136xf32> to vector<136x1xf32>
    %c0_9 = arith.constant 0 : index
    %c0_10 = arith.constant 0 : index
    %14 = vector.load %arg5[%c0_9, %c0_10] : memref<1x1xf32, #tpu.memory_space<vmem>>, vector<1x1xf32>
    %15 = vector.broadcast %14 : vector<1x1xf32> to vector<136x1xf32>
    %16 = arith.addf %13, %15 : vector<136x1xf32>
    %c0_11 = arith.constant 0 : index
    %c0_12 = arith.constant 0 : index
    %17 = vector.load %arg6[%c0_11, %c0_12] : memref<136x1xf32, #tpu.memory_space<vmem>>, vector<136x1xf32>
    tpu.vector_store %arg6[%c0_11, %c0_12], %16 {strides = array<i32>} : memref<136x1xf32, #tpu.memory_space<vmem>>, vector<136x1xf32>,
    return
  }
  func.func @transform_0(%arg0: i32) -> (i32, i32) {
    %c0_i32 = arith.constant 0 : i32
    %c0_i32_0 = arith.constant 0 : i32
    return %arg0, %c0_i32 : i32, i32
  }
  func.func @transform_1(%arg0: i32) -> (i32, i32) {
    %c0_i32 = arith.constant 0 : i32
    %c0_i32_0 = arith.constant 0 : i32
    %c0_i32_1 = arith.constant 0 : i32
    return %c0_i32, %c0_i32_0 : i32, i32
  }
  func.func @transform_2(%arg0: i32) -> (i32, i32) {
    %c0_i32 = arith.constant 0 : i32
    %c0_i32_0 = arith.constant 0 : i32
    %c0_i32_1 = arith.constant 0 : i32
    return %c0_i32, %c0_i32_0 : i32, i32
  }
  func.func @transform_3(%arg0: i32) -> (i32, i32) {
    %c0_i32 = arith.constant 0 : i32
    %c0_i32_0 = arith.constant 0 : i32
    %c0_i32_1 = arith.constant 0 : i32
    return %c0_i32, %c0_i32_0 : i32, i32
  }
  func.func @transform_4(%arg0: i32) -> (i32, i32) {
    %c0_i32 = arith.constant 0 : i32
    %c0_i32_0 = arith.constant 0 : i32
    %c0_i32_1 = arith.constant 0 : i32
    return %c0_i32, %c0_i32_0 : i32, i32
  }
  func.func @transform_5(%arg0: i32) -> (i32, i32) {
    %c0_i32 = arith.constant 0 : i32
    %c0_i32_0 = arith.constant 0 : i32
    return %arg0, %c0_i32 : i32, i32
  }
}

</mosaic_0001>

<llo_original>
// kernel: tpu_custom_call.1
$region0: #{tpu_custom_call.1}
  #allocation0 [shape = 'u32[]', space=smem, size = 0x4, offset = 0x4, fixed_abs, tag = 'smem constant byte address 0x4 - core index']
  #allocation1 [shape = 'u32[144,128]{1,0:T(1,128)}', space=vmem, size = 0x12000, scoped, tag = 'internal scratch']
  #allocation2 [shape = 'f32[1,1]{1,0:T(1,128)S(1)}', space=vmem, size = 0x200, scoped, tag = 'scoped memory for tpu_custom_call.1']
  %s0 = inlined_call_operand.hbm [shape: f32[272,2304], index: 0, kind: input, shape index: {}]
  %s1 = inlined_call_operand.vmem [shape: bf16[2304,64], index: 1, kind: input, shape index: {}]
  %s2 = inlined_call_operand.hbm [shape: f32[1,64], index: 2, kind: input, shape index: {}]
  %s3 = inlined_call_operand.hbm [shape: f32[1,64], index: 3, kind: input, shape index: {}]
  %s4 = inlined_call_operand.<no memory space> [shape: f32[1,1], index: 4, kind: input, shape index: {}]
  %s5 = inlined_call_operand.vmem [shape: f32[272,1], index: 5, kind: output, shape index: {}]
  %s6 = sld [smem:[#allocation0]]
  $region65: #{tpu_custom_call.1} parent=0
    _
  %s8 = ssub.s32 1, %s6
  %s9 = scalar_select 0, %s8, %s6
  %v10 = vstv %s4
  %11 = vst [vmem:[#allocation2] sm:$0x1] %v10
  $region1: #{tpu_custom_call.1} parent=0
    #allocation3 [shape = 'u8[2506752]{0}', space=vmem, size = 0x264000, scoped, tag = 'input window, operand 0']
    #allocation4 [shape = 's32[2]{0}', space=sflag, size = 0x8, scoped, tag = 'scoped memory for tpu_custom_call.1']
    #allocation5 [shape = 'u8[512]{0}', space=vmem, size = 0x400, scoped, tag = 'input window, operand 2, single buffered']
    #allocation6 [shape = 's32[1]{0}', space=sflag, size = 0x4, scoped, tag = 'scoped memory for tpu_custom_call.1']
    #allocation7 [shape = 'u8[512]{0}', space=vmem, size = 0x400, scoped, tag = 'input window, operand 3, single buffered']
    %12 = vsyncpa [#allocation4], 0
    %s13 = scalar_lea.sflag [#allocation4], 1
    %14 = vsyncpa %s13, 0
    %15 = vsyncpa [#allocation6], 0
    loop: start=0, step=1, limit=4
    $region2: #{tpu_custom_call.1} parent=1 // loop_pre_header
      _
    $region3: #{tpu_custom_call.1} parent=1 // loop_header
      %s17 = sphi 0, %s21
      %p18 = scmp.ge.s32.totalorder %s17, 4
      %s27 = sphi 0, %s29
      %s30 = sphi 0, %s27
      %s31 = sphi 0, %s30
      %s47 = sphi 0, %s31
      %s51 = sphi 0, %s51
      %s53 = sphi 0, %s51
      %s54 = sphi 0, %s53
      %s68 = sphi 0, %s54
      %s72 = sphi 0, %s72
      %s74 = sphi 0, %s72
      %s75 = sphi 0, %s74
      %s89 = sphi 0, %s75
      %s93 = sphi 0, %s93
      %s95 = sphi 0, %s93
      %s96 = sphi 0, %s95
      %s110 = sphi 0, %s96
      %s114 = sphi 0, %s114
      %s116 = sphi 0, %s114
      %s117 = sphi 0, %s116
      %s131 = sphi 0, %s117
      %s137 = sphi 0, %s139
      %s140 = sphi 0, %s137
      %s141 = sphi 0, %s140
      %s157 = sphi 0, %s141
    $region4: #{tpu_custom_call.1} parent=1 // loop_header_branch
      %20 = sbr.rel (%p18) target = $region8
    $region5: #{tpu_custom_call.1} parent=1 // loop_body
      %s22 = ssub.s32 %s17, 1
      %s23 = ssub.s32 %s17, 2
      %s24 = sadd.s32 %s17, 1
      %s25 = ssub.s32 %s17, %s24
      %p26 = scmp.eq.s32.totalorder %s25, 0
      %s28 = sadd.s32 %s27, 1
      %s29 = scalar_select %p26, %s27, %s28
      %p32 = pneg %p26
      %p33 = scmp.eq.s32.totalorder %s17, 1
      %p34 = por %p32, %p33
      %p35 = scmp.ne.s32.totalorder %s27, %s30
      %p36 = scmp.eq.s32.totalorder %s17, 0
      %p37 = por %p35, %p36
      %p38 = scmp.ne.s32.totalorder %s27, %s30
      %p39 = scmp.eq.s32.totalorder %s22, 1
      %p40 = por %p38, %p39
      %p41 = scmp.ne.s32.totalorder %s30, %s31
      %p42 = scmp.eq.s32.totalorder %s22, 0
      %p43 = por %p41, %p42
      %p44 = scmp.ne.s32.totalorder %s30, %s31
      %p45 = scmp.eq.s32.totalorder %s23, 1
      %p46 = por %p44, %p45
      %p48 = scmp.ne.s32.totalorder %s31, %s47
      %p49 = scmp.eq.s32.totalorder %s23, 0
      %p50 = por %p48, %p49
      %s52 = sadd.s32 %s51, 1
      %p55 = scmp.eq.s32.totalorder %s17, 1
      %p56 = scmp.ne.s32.totalorder %s51, %s53
      %p57 = scmp.eq.s32.totalorder %s17, 0
      %p58 = por %p56, %p57
      %p59 = scmp.ne.s32.totalorder %s51, %s53
      %p60 = scmp.eq.s32.totalorder %s22, 1
      %p61 = por %p59, %p60
      %p62 = scmp.ne.s32.totalorder %s53, %s54
      %p63 = scmp.eq.s32.totalorder %s22, 0
      %p64 = por %p62, %p63
      %p65 = scmp.ne.s32.totalorder %s53, %s54
      %p66 = scmp.eq.s32.totalorder %s23, 1
      %p67 = por %p65, %p66
      %p69 = scmp.ne.s32.totalorder %s54, %s68
      %p70 = scmp.eq.s32.totalorder %s23, 0
      %p71 = por %p69, %p70
      %s73 = sadd.s32 %s72, 1
      %p76 = scmp.eq.s32.totalorder %s17, 1
      %p77 = scmp.ne.s32.totalorder %s72, %s74
      %p78 = scmp.eq.s32.totalorder %s17, 0
      %p79 = por %p77, %p78
      %p80 = scmp.ne.s32.totalorder %s72, %s74
      %p81 = scmp.eq.s32.totalorder %s22, 1
      %p82 = por %p80, %p81
      %p83 = scmp.ne.s32.totalorder %s74, %s75
      %p84 = scmp.eq.s32.totalorder %s22, 0
      %p85 = por %p83, %p84
      %p86 = scmp.ne.s32.totalorder %s74, %s75
      %p87 = scmp.eq.s32.totalorder %s23, 1
      %p88 = por %p86, %p87
      %p90 = scmp.ne.s32.totalorder %s75, %s89
      %p91 = scmp.eq.s32.totalorder %s23, 0
      %p92 = por %p90, %p91
      %s94 = sadd.s32 %s93, 1
      %p97 = scmp.eq.s32.totalorder %s17, 1
      %p98 = scmp.ne.s32.totalorder %s93, %s95
      %p99 = scmp.eq.s32.totalorder %s17, 0
      %p100 = por %p98, %p99
      %p101 = scmp.ne.s32.totalorder %s93, %s95
      %p102 = scmp.eq.s32.totalorder %s22, 1
      %p103 = por %p101, %p102
      %p104 = scmp.ne.s32.totalorder %s95, %s96
      %p105 = scmp.eq.s32.totalorder %s22, 0
      %p106 = por %p104, %p105
      %p107 = scmp.ne.s32.totalorder %s95, %s96
      %p108 = scmp.eq.s32.totalorder %s23, 1
      %p109 = por %p107, %p108
      %p111 = scmp.ne.s32.totalorder %s96, %s110
      %p112 = scmp.eq.s32.totalorder %s23, 0
      %p113 = por %p111, %p112
      %s115 = sadd.s32 %s114, 1
      %p118 = scmp.eq.s32.totalorder %s17, 1
      %p119 = scmp.ne.s32.totalorder %s114, %s116
      %p120 = scmp.eq.s32.totalorder %s17, 0
      %p121 = por %p119, %p120
      %p122 = scmp.ne.s32.totalorder %s114, %s116
      %p123 = scmp.eq.s32.totalorder %s22, 1
      %p124 = por %p122, %p123
      %p125 = scmp.ne.s32.totalorder %s116, %s117
      %p126 = scmp.eq.s32.totalorder %s22, 0
      %p127 = por %p125, %p126
      %p128 = scmp.ne.s32.totalorder %s116, %s117
      %p129 = scmp.eq.s32.totalorder %s23, 1
      %p130 = por %p128, %p129
      %p132 = scmp.ne.s32.totalorder %s117, %s131
      %p133 = scmp.eq.s32.totalorder %s23, 0
      %p134 = por %p132, %p133
      %s135 = ssub.s32 %s17, %s24
      %p136 = scmp.eq.s32.totalorder %s135, 0
      %s138 = sadd.s32 %s137, 1
      %s139 = scalar_select %p136, %s137, %s138
      %p142 = pneg %p136
      %p143 = scmp.eq.s32.totalorder %s17, 1
      %p144 = por %p142, %p143
      %p145 = scmp.ne.s32.totalorder %s137, %s140
      %p146 = scmp.eq.s32.totalorder %s17, 0
      %p147 = por %p145, %p146
      %p148 = scmp.ne.s32.totalorder %s137, %s140
      %p149 = scmp.eq.s32.totalorder %s22, 1
      %p150 = por %p148, %p149
      %p151 = scmp.ne.s32.totalorder %s140, %s141
      %p152 = scmp.eq.s32.totalorder %s22, 0
      %p153 = por %p151, %p152
      %p154 = scmp.ne.s32.totalorder %s140, %s141
      %p155 = scmp.eq.s32.totalorder %s23, 1
      %p156 = por %p154, %p155
      %p158 = scmp.ne.s32.totalorder %s141, %s157
      %p159 = scmp.eq.s32.totalorder %s23, 0
      %p160 = por %p158, %p159
      %p161 = scmp.le.s32.totalorder 1, %s17
      %p162 = scmp.lt.s32.totalorder %s17, 3
      %p163 = pnand %p161, %p162
      %p164 = pneg %p163
      // Predicated region
      $region9: #{tpu_custom_call.1} parent=5 // pred_check
        _
      $region10: #{tpu_custom_call.1} parent=5 // pred_check_branch
        %166 = sbr.rel (%p163) target = $region12
      $region11: #{tpu_custom_call.1} parent=5 // pred_region
        %s167 = ssub.s32 %s17, 1
        // Predicated region
        $region13: #{tpu_custom_call.1} parent=11 // pred_check
          %p168 = pneg %p64
        $region14: #{tpu_custom_call.1} parent=11 // pred_check_branch
          %170 = sbr.rel (%p168) target = $region16
        $region15: #{tpu_custom_call.1} parent=11 // pred_region
          _
        $region16: #{tpu_custom_call.1} parent=11 // pred_fallthru
          _
        // Predicated region
        $region17: #{tpu_custom_call.1} parent=11 // pred_check
          %p171 = pneg %p85
        $region18: #{tpu_custom_call.1} parent=11 // pred_check_branch
          %173 = sbr.rel (%p171) target = $region20
        $region19: #{tpu_custom_call.1} parent=11 // pred_region
          %s175 = ssub.s32 16, 16
          %176 = vsyncadd [#allocation6], %s175
          %s178 = sshll.u32 [#allocation5], 4
          %s179 = int_to_ptr.vmem [resolvable:$true] %s178
          %181 = dma.hbm_to_vmem [thread:$0]  %s2, 16, %s179, [#allocation6]
        $region20: #{tpu_custom_call.1} parent=11 // pred_fallthru
          _
        // Predicated region
        $region21: #{tpu_custom_call.1} parent=11 // pred_check
          %p182 = pneg %p106
        $region22: #{tpu_custom_call.1} parent=11 // pred_check_branch
          %184 = sbr.rel (%p182) target = $region24
        $region23: #{tpu_custom_call.1} parent=11 // pred_region
          %s186 = ssub.s32 16, 16
          %187 = vsyncadd [#allocation6], %s186
          %s189 = sshll.u32 [#allocation7], 4
          %s190 = int_to_ptr.vmem [resolvable:$true] %s189
          %192 = dma.hbm_to_vmem [thread:$0]  %s3, 16, %s190, [#allocation6]
        $region24: #{tpu_custom_call.1} parent=11 // pred_fallthru
          _
        // Predicated region
        $region25: #{tpu_custom_call.1} parent=11 // pred_check
          %p193 = pneg %p127
        $region26: #{tpu_custom_call.1} parent=11 // pred_check_branch
          %195 = sbr.rel (%p193) target = $region28
        $region27: #{tpu_custom_call.1} parent=11 // pred_region
          _
        $region28: #{tpu_custom_call.1} parent=11 // pred_fallthru
          _
      $region12: #{tpu_custom_call.1} parent=5 // pred_fallthru
        _
      %p196 = scmp.lt.s32.totalorder %s17, 2
      // Predicated region
      $region29: #{tpu_custom_call.1} parent=5 // pred_check
        %p197 = pneg %p196
      $region30: #{tpu_custom_call.1} parent=5 // pred_check_branch
        %199 = sbr.rel (%p197) target = $region32
      $region31: #{tpu_custom_call.1} parent=5 // pred_region
        // Predicated region
        $region33: #{tpu_custom_call.1} parent=31 // pred_check
          %p200 = pneg %p37
        $region34: #{tpu_custom_call.1} parent=31 // pred_check_branch
          %202 = sbr.rel (%p200) target = $region36
        $region35: #{tpu_custom_call.1} parent=31 // pred_region
          %s203 = sand.u32 %s27, 1
          %s204 = scalar_lea.sflag [#allocation4], %s203
          %s205 = sand.u32 %s27, 1
          %s206 = smul.addr %s205, 2448
          %s207 = scalar_lea.vmem [#allocation3], %s206
          %s208 = smul.u32 17, %s17
          %s210 = ssub.s32 39168, 39168
          %211 = vsyncadd %s204, %s210
          %s212 = smul.addr %s208, 18
          %s213 = smul.addr %s212, 128
          %s214 = scalar_lea.hbm %s0, %s213
          %s215 = sshll.u32 %s207, 4
          %s216 = int_to_ptr.vmem [resolvable:$true] %s215
          %221 = dma.hbm_to_vmem [thread:$0]  %s214, 39168, %s216, %s204, 2304, 2304, 144
        $region36: #{tpu_custom_call.1} parent=31 // pred_fallthru
          _
      $region32: #{tpu_custom_call.1} parent=5 // pred_fallthru
        _
      %p222 = scmp.le.s32.totalorder 1, %s17
      %p223 = scmp.lt.s32.totalorder %s17, 3
      %p224 = pnand %p222, %p223
      %p225 = pneg %p224
      // Predicated region
      $region37: #{tpu_custom_call.1} parent=5 // pred_check
        _
      $region38: #{tpu_custom_call.1} parent=5 // pred_check_branch
        %227 = sbr.rel (%p224) target = $region40
      $region39: #{tpu_custom_call.1} parent=5 // pred_region
        %s228 = ssub.s32 %s17, 1
        %s229 = sand.u32 %s30, 1
        %s230 = scalar_lea.sflag [#allocation4], %s229
        %s231 = sand.u32 %s30, 1
        %s232 = smul.addr %s231, 2448
        %s233 = scalar_lea.vmem [#allocation3], %s232
        // Predicated region
        $region41: #{tpu_custom_call.1} parent=39 // pred_check
          %p234 = pneg %p43
        $region42: #{tpu_custom_call.1} parent=39 // pred_check_branch
          %236 = sbr.rel (%p234) target = $region44
        $region43: #{tpu_custom_call.1} parent=39 // pred_region
          %237 = dma.done %s230, 39168
        $region44: #{tpu_custom_call.1} parent=39 // pred_fallthru
          _
        // Predicated region
        $region45: #{tpu_custom_call.1} parent=39 // pred_check
          %p238 = pneg %p85
        $region46: #{tpu_custom_call.1} parent=39 // pred_check_branch
          %240 = sbr.rel (%p238) target = $region48
        $region47: #{tpu_custom_call.1} parent=39 // pred_region
          %241 = dma.done [#allocation6], 16
        $region48: #{tpu_custom_call.1} parent=39 // pred_fallthru
          _
        // Predicated region
        $region49: #{tpu_custom_call.1} parent=39 // pred_check
          %p242 = pneg %p106
        $region50: #{tpu_custom_call.1} parent=39 // pred_check_branch
          %244 = sbr.rel (%p242) target = $region52
        $region51: #{tpu_custom_call.1} parent=39 // pred_region
          %245 = dma.done [#allocation6], 16
        $region52: #{tpu_custom_call.1} parent=39 // pred_fallthru
          _
        %s246 = sand.u32 %s30, 1
        %s247 = scalar_lea.sflag [#allocation4], %s246
        %s248 = sand.u32 %s30, 1
        %s249 = smul.addr %s248, 2448
        %s250 = scalar_lea.vmem [#allocation3], %s249
        %p251 = pneg %p43
        %p252 = pneg %p40
        %p253 = pneg %p64
        %p254 = pneg %p61
        %p255 = pneg %p85
        %p256 = pneg %p82
        %p257 = pneg %p106
        %p258 = pneg %p103
        %p259 = pneg %p127
        %p260 = pneg %p124
        %p261 = pneg %p153
        %p262 = pneg %p150
        %s263 = smul.u32 17, %s22
        %p264 = scmp.lt.s32.totalorder %s263, 33
        %s265 = scalar_select %p264, %s263, 33
        %s266 = smul.addr %s265, 8
        %s267 = scalar_lea.vmem %s5, %s266
        %s268 = smul.u32 17, %s22
        %s269 = smul.u32 17, %s22
        %p270 = scmp.lt.s32.totalorder %s269, 33
        %s271 = scalar_select %p270, %s269, 33
        %s272 = smul.addr %s271, 8
        %s273 = scalar_lea.vmem %s5, %s272
        %s274 = smul.u32 17, %s22
        %v276 = vld [vmem:[%s233] sm:$0xff]
        %v277 = vld [vmem:[%s233 + $0x8] sm:$0xff]
        %v278 = vld [vmem:[%s233 + $0x10] sm:$0xff]
        %v279 = vld [vmem:[%s233 + $0x18] sm:$0xff]
        %v280 = vld [vmem:[%s233 + $0x20] sm:$0xff]
        %v281 = vld [vmem:[%s233 + $0x28] sm:$0xff]
        %v282 = vld [vmem:[%s233 + $0x30] sm:$0xff]
        %v283 = vld [vmem:[%s233 + $0x38] sm:$0xff]
        %v284 = vld [vmem:[%s233 + $0x40] sm:$0xff]
        %v285 = vld [vmem:[%s233 + $0x48] sm:$0xff]
        %v286 = vld [vmem:[%s233 + $0x50] sm:$0xff]
        %v287 = vld [vmem:[%s233 + $0x58] sm:$0xff]
        %v288 = vld [vmem:[%s233 + $0x60] sm:$0xff]
        %v289 = vld [vmem:[%s233 + $0x68] sm:$0xff]
        %v290 = vld [vmem:[%s233 + $0x70] sm:$0xff]
        %v291 = vld [vmem:[%s233 + $0x78] sm:$0xff]
        %v292 = vld [vmem:[%s233 + $0x80] sm:$0xff]
        %v293 = vld [vmem:[%s233 + $0x88] sm:$0xff]
        %v294 = vld [vmem:[%s233 + $0x90] sm:$0xff]
        %v295 = vld [vmem:[%s233 + $0x98] sm:$0xff]
        %v296 = vld [vmem:[%s233 + $0xa0] sm:$0xff]
        %v297 = vld [vmem:[%s233 + $0xa8] sm:$0xff]
        %v298 = vld [vmem:[%s233 + $0xb0] sm:$0xff]
        %v299 = vld [vmem:[%s233 + $0xb8] sm:$0xff]
        %v300 = vld [vmem:[%s233 + $0xc0] sm:$0xff]
        %v301 = vld [vmem:[%s233 + $0xc8] sm:$0xff]
        %v302 = vld [vmem:[%s233 + $0xd0] sm:$0xff]
        %v303 = vld [vmem:[%s233 + $0xd8] sm:$0xff]
        %v304 = vld [vmem:[%s233 + $0xe0] sm:$0xff]
        %v305 = vld [vmem:[%s233 + $0xe8] sm:$0xff]
        %v306 = vld [vmem:[%s233 + $0xf0] sm:$0xff]
        %v307 = vld [vmem:[%s233 + $0xf8] sm:$0xff]
        %v308 = vld [vmem:[%s233 + $0x100] sm:$0xff]
        %v309 = vld [vmem:[%s233 + $0x108] sm:$0xff]
        %v310 = vld [vmem:[%s233 + $0x110] sm:$0xff]
        %v311 = vld [vmem:[%s233 + $0x118] sm:$0xff]
        %v312 = vld [vmem:[%s233 + $0x120] sm:$0xff]
        %v313 = vld [vmem:[%s233 + $0x128] sm:$0xff]
        %v314 = vld [vmem:[%s233 + $0x130] sm:$0xff]
        %v315 = vld [vmem:[%s233 + $0x138] sm:$0xff]
        %v316 = vld [vmem:[%s233 + $0x140] sm:$0xff]
        %v317 = vld [vmem:[%s233 + $0x148] sm:$0xff]
        %v318 = vld [vmem:[%s233 + $0x150] sm:$0xff]
        %v319 = vld [vmem:[%s233 + $0x158] sm:$0xff]
        %v320 = vld [vmem:[%s233 + $0x160] sm:$0xff]
        %v321 = vld [vmem:[%s233 + $0x168] sm:$0xff]
        %v322 = vld [vmem:[%s233 + $0x170] sm:$0xff]
        %v323 = vld [vmem:[%s233 + $0x178] sm:$0xff]
        %v324 = vld [vmem:[%s233 + $0x180] sm:$0xff]
        %v325 = vld [vmem:[%s233 + $0x188] sm:$0xff]
        %v326 = vld [vmem:[%s233 + $0x190] sm:$0xff]
        %v327 = vld [vmem:[%s233 + $0x198] sm:$0xff]
        %v328 = vld [vmem:[%s233 + $0x1a0] sm:$0xff]
        %v329 = vld [vmem:[%s233 + $0x1a8] sm:$0xff]
        %v330 = vld [vmem:[%s233 + $0x1b0] sm:$0xff]
        %v331 = vld [vmem:[%s233 + $0x1b8] sm:$0xff]
        %v332 = vld [vmem:[%s233 + $0x1c0] sm:$0xff]
        %v333 = vld [vmem:[%s233 + $0x1c8] sm:$0xff]
        %v334 = vld [vmem:[%s233 + $0x1d0] sm:$0xff]
        %v335 = vld [vmem:[%s233 + $0x1d8] sm:$0xff]
        %v336 = vld [vmem:[%s233 + $0x1e0] sm:$0xff]
        %v337 = vld [vmem:[%s233 + $0x1e8] sm:$0xff]
        %v338 = vld [vmem:[%s233 + $0x1f0] sm:$0xff]
        %v339 = vld [vmem:[%s233 + $0x1f8] sm:$0xff]
        %v340 = vld [vmem:[%s233 + $0x200] sm:$0xff]
        %v341 = vld [vmem:[%s233 + $0x208] sm:$0xff]
        %v342 = vld [vmem:[%s233 + $0x210] sm:$0xff]
        %v343 = vld [vmem:[%s233 + $0x218] sm:$0xff]
        %v344 = vld [vmem:[%s233 + $0x220] sm:$0xff]
        %v345 = vld [vmem:[%s233 + $0x228] sm:$0xff]
        %v346 = vld [vmem:[%s233 + $0x230] sm:$0xff]
        %v347 = vld [vmem:[%s233 + $0x238] sm:$0xff]
        %v348 = vld [vmem:[%s233 + $0x240] sm:$0xff]
        %v349 = vld [vmem:[%s233 + $0x248] sm:$0xff]
        %v350 = vld [vmem:[%s233 + $0x250] sm:$0xff]
        %v351 = vld [vmem:[%s233 + $0x258] sm:$0xff]
        %v352 = vld [vmem:[%s233 + $0x260] sm:$0xff]
        %v353 = vld [vmem:[%s233 + $0x268] sm:$0xff]
        %v354 = vld [vmem:[%s233 + $0x270] sm:$0xff]
        %v355 = vld [vmem:[%s233 + $0x278] sm:$0xff]
        %v356 = vld [vmem:[%s233 + $0x280] sm:$0xff]
        %v357 = vld [vmem:[%s233 + $0x288] sm:$0xff]
        %v358 = vld [vmem:[%s233 + $0x290] sm:$0xff]
        %v359 = vld [vmem:[%s233 + $0x298] sm:$0xff]
        %v360 = vld [vmem:[%s233 + $0x2a0] sm:$0xff]
        %v361 = vld [vmem:[%s233 + $0x2a8] sm:$0xff]
        %v362 = vld [vmem:[%s233 + $0x2b0] sm:$0xff]
        %v363 = vld [vmem:[%s233 + $0x2b8] sm:$0xff]
        %v364 = vld [vmem:[%s233 + $0x2c0] sm:$0xff]
        %v365 = vld [vmem:[%s233 + $0x2c8] sm:$0xff]
        %v366 = vld [vmem:[%s233 + $0x2d0] sm:$0xff]
        %v367 = vld [vmem:[%s233 + $0x2d8] sm:$0xff]
        %v368 = vld [vmem:[%s233 + $0x2e0] sm:$0xff]
        %v369 = vld [vmem:[%s233 + $0x2e8] sm:$0xff]
        %v370 = vld [vmem:[%s233 + $0x2f0] sm:$0xff]
        %v371 = vld [vmem:[%s233 + $0x2f8] sm:$0xff]
        %v372 = vld [vmem:[%s233 + $0x300] sm:$0xff]
        %v373 = vld [vmem:[%s233 + $0x308] sm:$0xff]
        %v374 = vld [vmem:[%s233 + $0x310] sm:$0xff]
        %v375 = vld [vmem:[%s233 + $0x318] sm:$0xff]
        %v376 = vld [vmem:[%s233 + $0x320] sm:$0xff]
        %v377 = vld [vmem:[%s233 + $0x328] sm:$0xff]
        %v378 = vld [vmem:[%s233 + $0x330] sm:$0xff]
        %v379 = vld [vmem:[%s233 + $0x338] sm:$0xff]
        %v380 = vld [vmem:[%s233 + $0x340] sm:$0xff]
        %v381 = vld [vmem:[%s233 + $0x348] sm:$0xff]
        %v382 = vld [vmem:[%s233 + $0x350] sm:$0xff]
        %v383 = vld [vmem:[%s233 + $0x358] sm:$0xff]
        %v384 = vld [vmem:[%s233 + $0x360] sm:$0xff]
        %v385 = vld [vmem:[%s233 + $0x368] sm:$0xff]
        %v386 = vld [vmem:[%s233 + $0x370] sm:$0xff]
        %v387 = vld [vmem:[%s233 + $0x378] sm:$0xff]
        %v388 = vld [vmem:[%s233 + $0x380] sm:$0xff]
        %v389 = vld [vmem:[%s233 + $0x388] sm:$0xff]
        %v390 = vld [vmem:[%s233 + $0x390] sm:$0xff]
        %v391 = vld [vmem:[%s233 + $0x398] sm:$0xff]
        %v392 = vld [vmem:[%s233 + $0x3a0] sm:$0xff]
        %v393 = vld [vmem:[%s233 + $0x3a8] sm:$0xff]
        %v394 = vld [vmem:[%s233 + $0x3b0] sm:$0xff]
        %v395 = vld [vmem:[%s233 + $0x3b8] sm:$0xff]
        %v396 = vld [vmem:[%s233 + $0x3c0] sm:$0xff]
        %v397 = vld [vmem:[%s233 + $0x3c8] sm:$0xff]
        %v398 = vld [vmem:[%s233 + $0x3d0] sm:$0xff]
        %v399 = vld [vmem:[%s233 + $0x3d8] sm:$0xff]
        %v400 = vld [vmem:[%s233 + $0x3e0] sm:$0xff]
        %v401 = vld [vmem:[%s233 + $0x3e8] sm:$0xff]
        %v402 = vld [vmem:[%s233 + $0x3f0] sm:$0xff]
        %v403 = vld [vmem:[%s233 + $0x3f8] sm:$0xff]
        %v404 = vld [vmem:[%s233 + $0x400] sm:$0xff]
        %v405 = vld [vmem:[%s233 + $0x408] sm:$0xff]
        %v406 = vld [vmem:[%s233 + $0x410] sm:$0xff]
        %v407 = vld [vmem:[%s233 + $0x418] sm:$0xff]
        %v408 = vld [vmem:[%s233 + $0x420] sm:$0xff]
        %v409 = vld [vmem:[%s233 + $0x428] sm:$0xff]
        %v410 = vld [vmem:[%s233 + $0x430] sm:$0xff]
        %v411 = vld [vmem:[%s233 + $0x438] sm:$0xff]
        %v412 = vld [vmem:[%s233 + $0x440] sm:$0xff]
        %v413 = vld [vmem:[%s233 + $0x448] sm:$0xff]
        %v414 = vld [vmem:[%s233 + $0x450] sm:$0xff]
        %v415 = vld [vmem:[%s233 + $0x458] sm:$0xff]
        %v416 = vld [vmem:[%s233 + $0x460] sm:$0xff]
        %v417 = vld [vmem:[%s233 + $0x468] sm:$0xff]
        %v418 = vld [vmem:[%s233 + $0x470] sm:$0xff]
        %v419 = vld [vmem:[%s233 + $0x478] sm:$0xff]
        %v420 = vld [vmem:[%s233 + $0x480] sm:$0xff]
        %v421 = vld [vmem:[%s233 + $0x488] sm:$0xff]
        %v422 = vld [vmem:[%s233 + $0x490] sm:$0xff]
        %v423 = vld [vmem:[%s233 + $0x498] sm:$0xff]
        %v424 = vld [vmem:[%s233 + $0x4a0] sm:$0xff]
        %v425 = vld [vmem:[%s233 + $0x4a8] sm:$0xff]
        %v426 = vld [vmem:[%s233 + $0x4b0] sm:$0xff]
        %v427 = vld [vmem:[%s233 + $0x4b8] sm:$0xff]
        %v428 = vld [vmem:[%s233 + $0x4c0] sm:$0xff]
        %v429 = vld [vmem:[%s233 + $0x4c8] sm:$0xff]
        %v430 = vld [vmem:[%s233 + $0x4d0] sm:$0xff]
        %v431 = vld [vmem:[%s233 + $0x4d8] sm:$0xff]
        %v432 = vld [vmem:[%s233 + $0x4e0] sm:$0xff]
        %v433 = vld [vmem:[%s233 + $0x4e8] sm:$0xff]
        %v434 = vld [vmem:[%s233 + $0x4f0] sm:$0xff]
        %v435 = vld [vmem:[%s233 + $0x4f8] sm:$0xff]
        %v436 = vld [vmem:[%s233 + $0x500] sm:$0xff]
        %v437 = vld [vmem:[%s233 + $0x508] sm:$0xff]
        %v438 = vld [vmem:[%s233 + $0x510] sm:$0xff]
        %v439 = vld [vmem:[%s233 + $0x518] sm:$0xff]
        %v440 = vld [vmem:[%s233 + $0x520] sm:$0xff]
        %v441 = vld [vmem:[%s233 + $0x528] sm:$0xff]
        %v442 = vld [vmem:[%s233 + $0x530] sm:$0xff]
        %v443 = vld [vmem:[%s233 + $0x538] sm:$0xff]
        %v444 = vld [vmem:[%s233 + $0x540] sm:$0xff]
        %v445 = vld [vmem:[%s233 + $0x548] sm:$0xff]
        %v446 = vld [vmem:[%s233 + $0x550] sm:$0xff]
        %v447 = vld [vmem:[%s233 + $0x558] sm:$0xff]
        %v448 = vld [vmem:[%s233 + $0x560] sm:$0xff]
        %v449 = vld [vmem:[%s233 + $0x568] sm:$0xff]
        %v450 = vld [vmem:[%s233 + $0x570] sm:$0xff]
        %v451 = vld [vmem:[%s233 + $0x578] sm:$0xff]
        %v452 = vld [vmem:[%s233 + $0x580] sm:$0xff]
        %v453 = vld [vmem:[%s233 + $0x588] sm:$0xff]
        %v454 = vld [vmem:[%s233 + $0x590] sm:$0xff]
        %v455 = vld [vmem:[%s233 + $0x598] sm:$0xff]
        %v456 = vld [vmem:[%s233 + $0x5a0] sm:$0xff]
        %v457 = vld [vmem:[%s233 + $0x5a8] sm:$0xff]
        %v458 = vld [vmem:[%s233 + $0x5b0] sm:$0xff]
        %v459 = vld [vmem:[%s233 + $0x5b8] sm:$0xff]
        %v460 = vld [vmem:[%s233 + $0x5c0] sm:$0xff]
        %v461 = vld [vmem:[%s233 + $0x5c8] sm:$0xff]
        %v462 = vld [vmem:[%s233 + $0x5d0] sm:$0xff]
        %v463 = vld [vmem:[%s233 + $0x5d8] sm:$0xff]
        %v464 = vld [vmem:[%s233 + $0x5e0] sm:$0xff]
        %v465 = vld [vmem:[%s233 + $0x5e8] sm:$0xff]
        %v466 = vld [vmem:[%s233 + $0x5f0] sm:$0xff]
        %v467 = vld [vmem:[%s233 + $0x5f8] sm:$0xff]
        %v468 = vld [vmem:[%s233 + $0x600] sm:$0xff]
        %v469 = vld [vmem:[%s233 + $0x608] sm:$0xff]
        %v470 = vld [vmem:[%s233 + $0x610] sm:$0xff]
        %v471 = vld [vmem:[%s233 + $0x618] sm:$0xff]
        %v472 = vld [vmem:[%s233 + $0x620] sm:$0xff]
        %v473 = vld [vmem:[%s233 + $0x628] sm:$0xff]
        %v474 = vld [vmem:[%s233 + $0x630] sm:$0xff]
        %v475 = vld [vmem:[%s233 + $0x638] sm:$0xff]
        %v476 = vld [vmem:[%s233 + $0x640] sm:$0xff]
        %v477 = vld [vmem:[%s233 + $0x648] sm:$0xff]
        %v478 = vld [vmem:[%s233 + $0x650] sm:$0xff]
        %v479 = vld [vmem:[%s233 + $0x658] sm:$0xff]
        %v480 = vld [vmem:[%s233 + $0x660] sm:$0xff]
        %v481 = vld [vmem:[%s233 + $0x668] sm:$0xff]
        %v482 = vld [vmem:[%s233 + $0x670] sm:$0xff]
        %v483 = vld [vmem:[%s233 + $0x678] sm:$0xff]
        %v484 = vld [vmem:[%s233 + $0x680] sm:$0xff]
        %v485 = vld [vmem:[%s233 + $0x688] sm:$0xff]
        %v486 = vld [vmem:[%s233 + $0x690] sm:$0xff]
        %v487 = vld [vmem:[%s233 + $0x698] sm:$0xff]
        %v488 = vld [vmem:[%s233 + $0x6a0] sm:$0xff]
        %v489 = vld [vmem:[%s233 + $0x6a8] sm:$0xff]
        %v490 = vld [vmem:[%s233 + $0x6b0] sm:$0xff]
        %v491 = vld [vmem:[%s233 + $0x6b8] sm:$0xff]
        %v492 = vld [vmem:[%s233 + $0x6c0] sm:$0xff]
        %v493 = vld [vmem:[%s233 + $0x6c8] sm:$0xff]
        %v494 = vld [vmem:[%s233 + $0x6d0] sm:$0xff]
        %v495 = vld [vmem:[%s233 + $0x6d8] sm:$0xff]
        %v496 = vld [vmem:[%s233 + $0x6e0] sm:$0xff]
        %v497 = vld [vmem:[%s233 + $0x6e8] sm:$0xff]
        %v498 = vld [vmem:[%s233 + $0x6f0] sm:$0xff]
        %v499 = vld [vmem:[%s233 + $0x6f8] sm:$0xff]
        %v500 = vld [vmem:[%s233 + $0x700] sm:$0xff]
        %v501 = vld [vmem:[%s233 + $0x708] sm:$0xff]
        %v502 = vld [vmem:[%s233 + $0x710] sm:$0xff]
        %v503 = vld [vmem:[%s233 + $0x718] sm:$0xff]
        %v504 = vld [vmem:[%s233 + $0x720] sm:$0xff]
        %v505 = vld [vmem:[%s233 + $0x728] sm:$0xff]
        %v506 = vld [vmem:[%s233 + $0x730] sm:$0xff]
        %v507 = vld [vmem:[%s233 + $0x738] sm:$0xff]
        %v508 = vld [vmem:[%s233 + $0x740] sm:$0xff]
        %v509 = vld [vmem:[%s233 + $0x748] sm:$0xff]
        %v510 = vld [vmem:[%s233 + $0x750] sm:$0xff]
        %v511 = vld [vmem:[%s233 + $0x758] sm:$0xff]
        %v512 = vld [vmem:[%s233 + $0x760] sm:$0xff]
        %v513 = vld [vmem:[%s233 + $0x768] sm:$0xff]
        %v514 = vld [vmem:[%s233 + $0x770] sm:$0xff]
        %v515 = vld [vmem:[%s233 + $0x778] sm:$0xff]
        %v516 = vld [vmem:[%s233 + $0x780] sm:$0xff]
        %v517 = vld [vmem:[%s233 + $0x788] sm:$0xff]
        %v518 = vld [vmem:[%s233 + $0x790] sm:$0xff]
        %v519 = vld [vmem:[%s233 + $0x798] sm:$0xff]
        %v520 = vld [vmem:[%s233 + $0x7a0] sm:$0xff]
        %v521 = vld [vmem:[%s233 + $0x7a8] sm:$0xff]
        %v522 = vld [vmem:[%s233 + $0x7b0] sm:$0xff]
        %v523 = vld [vmem:[%s233 + $0x7b8] sm:$0xff]
        %v524 = vld [vmem:[%s233 + $0x7c0] sm:$0xff]
        %v525 = vld [vmem:[%s233 + $0x7c8] sm:$0xff]
        %v526 = vld [vmem:[%s233 + $0x7d0] sm:$0xff]
        %v527 = vld [vmem:[%s233 + $0x7d8] sm:$0xff]
        %v528 = vld [vmem:[%s233 + $0x7e0] sm:$0xff]
        %v529 = vld [vmem:[%s233 + $0x7e8] sm:$0xff]
        %v530 = vld [vmem:[%s233 + $0x7f0] sm:$0xff]
        %v531 = vld [vmem:[%s233 + $0x7f8] sm:$0xff]
        %v532 = vld [vmem:[%s233 + $0x800] sm:$0xff]
        %v533 = vld [vmem:[%s233 + $0x808] sm:$0xff]
        %v534 = vld [vmem:[%s233 + $0x810] sm:$0xff]
        %v535 = vld [vmem:[%s233 + $0x818] sm:$0xff]
        %v536 = vld [vmem:[%s233 + $0x820] sm:$0xff]
        %v537 = vld [vmem:[%s233 + $0x828] sm:$0xff]
        %v538 = vld [vmem:[%s233 + $0x830] sm:$0xff]
        %v539 = vld [vmem:[%s233 + $0x838] sm:$0xff]
        %v540 = vld [vmem:[%s233 + $0x840] sm:$0xff]
        %v541 = vld [vmem:[%s233 + $0x848] sm:$0xff]
        %v542 = vld [vmem:[%s233 + $0x850] sm:$0xff]
        %v543 = vld [vmem:[%s233 + $0x858] sm:$0xff]
        %v544 = vld [vmem:[%s233 + $0x860] sm:$0xff]
        %v545 = vld [vmem:[%s233 + $0x868] sm:$0xff]
        %v546 = vld [vmem:[%s233 + $0x870] sm:$0xff]
        %v547 = vld [vmem:[%s233 + $0x878] sm:$0xff]
        %v548 = vld [vmem:[%s233 + $0x880] sm:$0xff]
        %v549 = vld [vmem:[%s233 + $0x888] sm:$0xff]
        %v550 = vld [vmem:[%s233 + $0x890] sm:$0xff]
        %v551 = vld [vmem:[%s233 + $0x898] sm:$0xff]
        %v552 = vld [vmem:[%s233 + $0x8a0] sm:$0xff]
        %v553 = vld [vmem:[%s233 + $0x8a8] sm:$0xff]
        %v554 = vld [vmem:[%s233 + $0x8b0] sm:$0xff]
        %v555 = vld [vmem:[%s233 + $0x8b8] sm:$0xff]
        %v556 = vld [vmem:[%s233 + $0x8c0] sm:$0xff]
        %v557 = vld [vmem:[%s233 + $0x8c8] sm:$0xff]
        %v558 = vld [vmem:[%s233 + $0x8d0] sm:$0xff]
        %v559 = vld [vmem:[%s233 + $0x8d8] sm:$0xff]
        %v560 = vld [vmem:[%s233 + $0x8e0] sm:$0xff]
        %v561 = vld [vmem:[%s233 + $0x8e8] sm:$0xff]
        %v562 = vld [vmem:[%s233 + $0x8f0] sm:$0xff]
        %v563 = vld [vmem:[%s233 + $0x8f8] sm:$0xff]
        %v564 = vld [vmem:[%s233 + $0x900] sm:$0xff]
        %v565 = vld [vmem:[%s233 + $0x908] sm:$0xff]
        %v566 = vld [vmem:[%s233 + $0x910] sm:$0xff]
        %v567 = vld [vmem:[%s233 + $0x918] sm:$0xff]
        %v568 = vld [vmem:[%s233 + $0x920] sm:$0xff]
        %v569 = vld [vmem:[%s233 + $0x928] sm:$0xff]
        %v570 = vld [vmem:[%s233 + $0x930] sm:$0xff]
        %v571 = vld [vmem:[%s233 + $0x938] sm:$0xff]
        %v572 = vld [vmem:[%s233 + $0x940] sm:$0xff]
        %v573 = vld [vmem:[%s233 + $0x948] sm:$0xff]
        %v574 = vld [vmem:[%s233 + $0x950] sm:$0xff]
        %v575 = vld [vmem:[%s233 + $0x958] sm:$0xff]
        %v576 = vld [vmem:[%s233 + $0x960] sm:$0xff]
        %v577 = vld [vmem:[%s233 + $0x968] sm:$0xff]
        %v578 = vld [vmem:[%s233 + $0x970] sm:$0xff]
        %v579 = vld [vmem:[%s233 + $0x978] sm:$0xff]
        %v580 = vld [vmem:[%s233 + $0x980] sm:$0xff]
        %v581 = vld [vmem:[%s233 + $0x988] sm:$0xff]
        %v582 = vpack.c.bf16 %v294, %v276
        %v583 = vpack.c.bf16 %v295, %v277
        %v584 = vpack.c.bf16 %v296, %v278
        %v585 = vpack.c.bf16 %v297, %v279
        %v586 = vpack.c.bf16 %v298, %v280
        %v587 = vpack.c.bf16 %v299, %v281
        %v588 = vpack.c.bf16 %v300, %v282
        %v589 = vpack.c.bf16 %v301, %v283
        %v590 = vpack.c.bf16 %v302, %v284
        %v591 = vpack.c.bf16 %v303, %v285
        %v592 = vpack.c.bf16 %v304, %v286
        %v593 = vpack.c.bf16 %v305, %v287
        %v594 = vpack.c.bf16 %v306, %v288
        %v595 = vpack.c.bf16 %v307, %v289
        %v596 = vpack.c.bf16 %v308, %v290
        %v597 = vpack.c.bf16 %v309, %v291
        %v598 = vpack.c.bf16 %v310, %v292
        %v599 = vpack.c.bf16 %v311, %v293
        %v600 = vpack.c.bf16 %v330, %v312
        %v601 = vpack.c.bf16 %v331, %v313
        %v602 = vpack.c.bf16 %v332, %v314
        %v603 = vpack.c.bf16 %v333, %v315
        %v604 = vpack.c.bf16 %v334, %v316
        %v605 = vpack.c.bf16 %v335, %v317
        %v606 = vpack.c.bf16 %v336, %v318
        %v607 = vpack.c.bf16 %v337, %v319
        %v608 = vpack.c.bf16 %v338, %v320
        %v609 = vpack.c.bf16 %v339, %v321
        %v610 = vpack.c.bf16 %v340, %v322
        %v611 = vpack.c.bf16 %v341, %v323
        %v612 = vpack.c.bf16 %v342, %v324
        %v613 = vpack.c.bf16 %v343, %v325
        %v614 = vpack.c.bf16 %v344, %v326
        %v615 = vpack.c.bf16 %v345, %v327
        %v616 = vpack.c.bf16 %v346, %v328
        %v617 = vpack.c.bf16 %v347, %v329
        %v618 = vpack.c.bf16 %v366, %v348
        %v619 = vpack.c.bf16 %v367, %v349
        %v620 = vpack.c.bf16 %v368, %v350
        %v621 = vpack.c.bf16 %v369, %v351
        %v622 = vpack.c.bf16 %v370, %v352
        %v623 = vpack.c.bf16 %v371, %v353
        %v624 = vpack.c.bf16 %v372, %v354
        %v625 = vpack.c.bf16 %v373, %v355
        %v626 = vpack.c.bf16 %v374, %v356
        %v627 = vpack.c.bf16 %v375, %v357
        %v628 = vpack.c.bf16 %v376, %v358
        %v629 = vpack.c.bf16 %v377, %v359
        %v630 = vpack.c.bf16 %v378, %v360
        %v631 = vpack.c.bf16 %v379, %v361
        %v632 = vpack.c.bf16 %v380, %v362
        %v633 = vpack.c.bf16 %v381, %v363
        %v634 = vpack.c.bf16 %v382, %v364
        %v635 = vpack.c.bf16 %v383, %v365
        %v636 = vpack.c.bf16 %v402, %v384
        %v637 = vpack.c.bf16 %v403, %v385
        %v638 = vpack.c.bf16 %v404, %v386
        %v639 = vpack.c.bf16 %v405, %v387
        %v640 = vpack.c.bf16 %v406, %v388
        %v641 = vpack.c.bf16 %v407, %v389
        %v642 = vpack.c.bf16 %v408, %v390
        %v643 = vpack.c.bf16 %v409, %v391
        %v644 = vpack.c.bf16 %v410, %v392
        %v645 = vpack.c.bf16 %v411, %v393
        %v646 = vpack.c.bf16 %v412, %v394
        %v647 = vpack.c.bf16 %v413, %v395
        %v648 = vpack.c.bf16 %v414, %v396
        %v649 = vpack.c.bf16 %v415, %v397
        %v650 = vpack.c.bf16 %v416, %v398
        %v651 = vpack.c.bf16 %v417, %v399
        %v652 = vpack.c.bf16 %v418, %v400
        %v653 = vpack.c.bf16 %v419, %v401
        %v654 = vpack.c.bf16 %v438, %v420
        %v655 = vpack.c.bf16 %v439, %v421
        %v656 = vpack.c.bf16 %v440, %v422
        %v657 = vpack.c.bf16 %v441, %v423
        %v658 = vpack.c.bf16 %v442, %v424
        %v659 = vpack.c.bf16 %v443, %v425
        %v660 = vpack.c.bf16 %v444, %v426
        %v661 = vpack.c.bf16 %v445, %v427
        %v662 = vpack.c.bf16 %v446, %v428
        %v663 = vpack.c.bf16 %v447, %v429
        %v664 = vpack.c.bf16 %v448, %v430
        %v665 = vpack.c.bf16 %v449, %v431
        %v666 = vpack.c.bf16 %v450, %v432
        %v667 = vpack.c.bf16 %v451, %v433
        %v668 = vpack.c.bf16 %v452, %v434
        %v669 = vpack.c.bf16 %v453, %v435
        %v670 = vpack.c.bf16 %v454, %v436
        %v671 = vpack.c.bf16 %v455, %v437
        %v672 = vpack.c.bf16 %v474, %v456
        %v673 = vpack.c.bf16 %v475, %v457
        %v674 = vpack.c.bf16 %v476, %v458
        %v675 = vpack.c.bf16 %v477, %v459
        %v676 = vpack.c.bf16 %v478, %v460
        %v677 = vpack.c.bf16 %v479, %v461
        %v678 = vpack.c.bf16 %v480, %v462
        %v679 = vpack.c.bf16 %v481, %v463
        %v680 = vpack.c.bf16 %v482, %v464
        %v681 = vpack.c.bf16 %v483, %v465
        %v682 = vpack.c.bf16 %v484, %v466
        %v683 = vpack.c.bf16 %v485, %v467
        %v684 = vpack.c.bf16 %v486, %v468
        %v685 = vpack.c.bf16 %v487, %v469
        %v686 = vpack.c.bf16 %v488, %v470
        %v687 = vpack.c.bf16 %v489, %v471
        %v688 = vpack.c.bf16 %v490, %v472
        %v689 = vpack.c.bf16 %v491, %v473
        %v690 = vpack.c.bf16 %v510, %v492
        %v691 = vpack.c.bf16 %v511, %v493
        %v692 = vpack.c.bf16 %v512, %v494
        %v693 = vpack.c.bf16 %v513, %v495
        %v694 = vpack.c.bf16 %v514, %v496
        %v695 = vpack.c.bf16 %v515, %v497
        %v696 = vpack.c.bf16 %v516, %v498
        %v697 = vpack.c.bf16 %v517, %v499
        %v698 = vpack.c.bf16 %v518, %v500
        %v699 = vpack.c.bf16 %v519, %v501
        %v700 = vpack.c.bf16 %v520, %v502
        %v701 = vpack.c.bf16 %v521, %v503
        %v702 = vpack.c.bf16 %v522, %v504
        %v703 = vpack.c.bf16 %v523, %v505
        %v704 = vpack.c.bf16 %v524, %v506
        %v705 = vpack.c.bf16 %v525, %v507
        %v706 = vpack.c.bf16 %v526, %v508
        %v707 = vpack.c.bf16 %v527, %v509
        %v708 = vpack.c.bf16 %v546, %v528
        %v709 = vpack.c.bf16 %v547, %v529
        %v710 = vpack.c.bf16 %v548, %v530
        %v711 = vpack.c.bf16 %v549, %v531
        %v712 = vpack.c.bf16 %v550, %v532
        %v713 = vpack.c.bf16 %v551, %v533
        %v714 = vpack.c.bf16 %v552, %v534
        %v715 = vpack.c.bf16 %v553, %v535
        %v716 = vpack.c.bf16 %v554, %v536
        %v717 = vpack.c.bf16 %v555, %v537
        %v718 = vpack.c.bf16 %v556, %v538
        %v719 = vpack.c.bf16 %v557, %v539
        %v720 = vpack.c.bf16 %v558, %v540
        %v721 = vpack.c.bf16 %v559, %v541
        %v722 = vpack.c.bf16 %v560, %v542
        %v723 = vpack.c.bf16 %v561, %v543
        %v724 = vpack.c.bf16 %v562, %v544
        %v725 = vpack.c.bf16 %v563, %v545
        %v726 = vpack.c.bf16 %v564, %v564
        %v727 = vpack.c.bf16 %v565, %v565
        %v728 = vpack.c.bf16 %v566, %v566
        %v729 = vpack.c.bf16 %v567, %v567
        %v730 = vpack.c.bf16 %v568, %v568
        %v731 = vpack.c.bf16 %v569, %v569
        %v732 = vpack.c.bf16 %v570, %v570
        %v733 = vpack.c.bf16 %v571, %v571
        %v734 = vpack.c.bf16 %v572, %v572
        %v735 = vpack.c.bf16 %v573, %v573
        %v736 = vpack.c.bf16 %v574, %v574
        %v737 = vpack.c.bf16 %v575, %v575
        %v738 = vpack.c.bf16 %v576, %v576
        %v739 = vpack.c.bf16 %v577, %v577
        %v740 = vpack.c.bf16 %v578, %v578
        %v741 = vpack.c.bf16 %v579, %v579
        %v742 = vpack.c.bf16 %v580, %v580
        %v743 = vpack.c.bf16 %v581, %v581
        %v744 = vld [vmem:[%s1] sm:$0xf]
        %v745 = vld [vmem:[%s1 + $0x4] sm:$0xf]
        %v746 = vld [vmem:[%s1 + $0x8] sm:$0xf]
        %v747 = vld [vmem:[%s1 + $0xc] sm:$0xf]
        %v748 = vld [vmem:[%s1 + $0x10] sm:$0xf]
        %v749 = vld [vmem:[%s1 + $0x14] sm:$0xf]
        %v750 = vld [vmem:[%s1 + $0x18] sm:$0xf]
        %v751 = vld [vmem:[%s1 + $0x1c] sm:$0xf]
        %v752 = vld [vmem:[%s1 + $0x20] sm:$0xf]
        %v753 = vld [vmem:[%s1 + $0x24] sm:$0xf]
        %v754 = vld [vmem:[%s1 + $0x28] sm:$0xf]
        %v755 = vld [vmem:[%s1 + $0x2c] sm:$0xf]
        %v756 = vld [vmem:[%s1 + $0x30] sm:$0xf]
        %v757 = vld [vmem:[%s1 + $0x34] sm:$0xf]
        %v758 = vld [vmem:[%s1 + $0x38] sm:$0xf]
        %v759 = vld [vmem:[%s1 + $0x3c] sm:$0xf]
        %v760 = vld [vmem:[%s1 + $0x40] sm:$0xf]
        %v761 = vld [vmem:[%s1 + $0x44] sm:$0xf]
        %v762 = vld [vmem:[%s1 + $0x48] sm:$0xf]
        %v763 = vld [vmem:[%s1 + $0x4c] sm:$0xf]
        %v764 = vld [vmem:[%s1 + $0x50] sm:$0xf]
        %v765 = vld [vmem:[%s1 + $0x54] sm:$0xf]
        %v766 = vld [vmem:[%s1 + $0x58] sm:$0xf]
        %v767 = vld [vmem:[%s1 + $0x5c] sm:$0xf]
        %v768 = vld [vmem:[%s1 + $0x60] sm:$0xf]
        %v769 = vld [vmem:[%s1 + $0x64] sm:$0xf]
        %v770 = vld [vmem:[%s1 + $0x68] sm:$0xf]
        %v771 = vld [vmem:[%s1 + $0x6c] sm:$0xf]
        %v772 = vld [vmem:[%s1 + $0x70] sm:$0xf]
        %v773 = vld [vmem:[%s1 + $0x74] sm:$0xf]
        %v774 = vld [vmem:[%s1 + $0x78] sm:$0xf]
        %v775 = vld [vmem:[%s1 + $0x7c] sm:$0xf]
        %v776 = vld [vmem:[%s1 + $0x80] sm:$0xf]
        %v777 = vld [vmem:[%s1 + $0x84] sm:$0xf]
        %v778 = vld [vmem:[%s1 + $0x88] sm:$0xf]
        %v779 = vld [vmem:[%s1 + $0x8c] sm:$0xf]
        %v780 = vld [vmem:[%s1 + $0x90] sm:$0xf]
        %v781 = vld [vmem:[%s1 + $0x94] sm:$0xf]
        %v782 = vld [vmem:[%s1 + $0x98] sm:$0xf]
        %v783 = vld [vmem:[%s1 + $0x9c] sm:$0xf]
        %v784 = vld [vmem:[%s1 + $0xa0] sm:$0xf]
        %v785 = vld [vmem:[%s1 + $0xa4] sm:$0xf]
        %v786 = vld [vmem:[%s1 + $0xa8] sm:$0xf]
        %v787 = vld [vmem:[%s1 + $0xac] sm:$0xf]
        %v788 = vld [vmem:[%s1 + $0xb0] sm:$0xf]
        %v789 = vld [vmem:[%s1 + $0xb4] sm:$0xf]
        %v790 = vld [vmem:[%s1 + $0xb8] sm:$0xf]
        %v791 = vld [vmem:[%s1 + $0xbc] sm:$0xf]
        %v792 = vld [vmem:[%s1 + $0xc0] sm:$0xf]
        %v793 = vld [vmem:[%s1 + $0xc4] sm:$0xf]
        %v794 = vld [vmem:[%s1 + $0xc8] sm:$0xf]
        %v795 = vld [vmem:[%s1 + $0xcc] sm:$0xf]
        %v796 = vld [vmem:[%s1 + $0xd0] sm:$0xf]
        %v797 = vld [vmem:[%s1 + $0xd4] sm:$0xf]
        %v798 = vld [vmem:[%s1 + $0xd8] sm:$0xf]
        %v799 = vld [vmem:[%s1 + $0xdc] sm:$0xf]
        %v800 = vld [vmem:[%s1 + $0xe0] sm:$0xf]
        %v801 = vld [vmem:[%s1 + $0xe4] sm:$0xf]
        %v802 = vld [vmem:[%s1 + $0xe8] sm:$0xf]
        %v803 = vld [vmem:[%s1 + $0xec] sm:$0xf]
        %v804 = vld [vmem:[%s1 + $0xf0] sm:$0xf]
        %v805 = vld [vmem:[%s1 + $0xf4] sm:$0xf]
        %v806 = vld [vmem:[%s1 + $0xf8] sm:$0xf]
        %v807 = vld [vmem:[%s1 + $0xfc] sm:$0xf]
        %v808 = vld [vmem:[%s1 + $0x100] sm:$0xf]
        %v809 = vld [vmem:[%s1 + $0x104] sm:$0xf]
        %v810 = vld [vmem:[%s1 + $0x108] sm:$0xf]
        %v811 = vld [vmem:[%s1 + $0x10c] sm:$0xf]
        %v812 = vld [vmem:[%s1 + $0x110] sm:$0xf]
        %v813 = vld [vmem:[%s1 + $0x114] sm:$0xf]
        %v814 = vld [vmem:[%s1 + $0x118] sm:$0xf]
        %v815 = vld [vmem:[%s1 + $0x11c] sm:$0xf]
        %v816 = vld [vmem:[%s1 + $0x120] sm:$0xf]
        %v817 = vld [vmem:[%s1 + $0x124] sm:$0xf]
        %v818 = vld [vmem:[%s1 + $0x128] sm:$0xf]
        %v819 = vld [vmem:[%s1 + $0x12c] sm:$0xf]
        %v820 = vld [vmem:[%s1 + $0x130] sm:$0xf]
        %v821 = vld [vmem:[%s1 + $0x134] sm:$0xf]
        %v822 = vld [vmem:[%s1 + $0x138] sm:$0xf]
        %v823 = vld [vmem:[%s1 + $0x13c] sm:$0xf]
        %v824 = vld [vmem:[%s1 + $0x140] sm:$0xf]
        %v825 = vld [vmem:[%s1 + $0x144] sm:$0xf]
        %v826 = vld [vmem:[%s1 + $0x148] sm:$0xf]
        %v827 = vld [vmem:[%s1 + $0x14c] sm:$0xf]
        %v828 = vld [vmem:[%s1 + $0x150] sm:$0xf]
        %v829 = vld [vmem:[%s1 + $0x154] sm:$0xf]
        %v830 = vld [vmem:[%s1 + $0x158] sm:$0xf]
        %v831 = vld [vmem:[%s1 + $0x15c] sm:$0xf]
        %v832 = vld [vmem:[%s1 + $0x160] sm:$0xf]
        %v833 = vld [vmem:[%s1 + $0x164] sm:$0xf]
        %v834 = vld [vmem:[%s1 + $0x168] sm:$0xf]
        %v835 = vld [vmem:[%s1 + $0x16c] sm:$0xf]
        %v836 = vld [vmem:[%s1 + $0x170] sm:$0xf]
        %v837 = vld [vmem:[%s1 + $0x174] sm:$0xf]
        %v838 = vld [vmem:[%s1 + $0x178] sm:$0xf]
        %v839 = vld [vmem:[%s1 + $0x17c] sm:$0xf]
        %v840 = vld [vmem:[%s1 + $0x180] sm:$0xf]
        %v841 = vld [vmem:[%s1 + $0x184] sm:$0xf]
        %v842 = vld [vmem:[%s1 + $0x188] sm:$0xf]
        %v843 = vld [vmem:[%s1 + $0x18c] sm:$0xf]
        %v844 = vld [vmem:[%s1 + $0x190] sm:$0xf]
        %v845 = vld [vmem:[%s1 + $0x194] sm:$0xf]
        %v846 = vld [vmem:[%s1 + $0x198] sm:$0xf]
        %v847 = vld [vmem:[%s1 + $0x19c] sm:$0xf]
        %v848 = vld [vmem:[%s1 + $0x1a0] sm:$0xf]
        %v849 = vld [vmem:[%s1 + $0x1a4] sm:$0xf]
        %v850 = vld [vmem:[%s1 + $0x1a8] sm:$0xf]
        %v851 = vld [vmem:[%s1 + $0x1ac] sm:$0xf]
        %v852 = vld [vmem:[%s1 + $0x1b0] sm:$0xf]
        %v853 = vld [vmem:[%s1 + $0x1b4] sm:$0xf]
        %v854 = vld [vmem:[%s1 + $0x1b8] sm:$0xf]
        %v855 = vld [vmem:[%s1 + $0x1bc] sm:$0xf]
        %v856 = vld [vmem:[%s1 + $0x1c0] sm:$0xf]
        %v857 = vld [vmem:[%s1 + $0x1c4] sm:$0xf]
        %v858 = vld [vmem:[%s1 + $0x1c8] sm:$0xf]
        %v859 = vld [vmem:[%s1 + $0x1cc] sm:$0xf]
        %v860 = vld [vmem:[%s1 + $0x1d0] sm:$0xf]
        %v861 = vld [vmem:[%s1 + $0x1d4] sm:$0xf]
        %v862 = vld [vmem:[%s1 + $0x1d8] sm:$0xf]
        %v863 = vld [vmem:[%s1 + $0x1dc] sm:$0xf]
        %v864 = vld [vmem:[%s1 + $0x1e0] sm:$0xf]
        %v865 = vld [vmem:[%s1 + $0x1e4] sm:$0xf]
        %v866 = vld [vmem:[%s1 + $0x1e8] sm:$0xf]
        %v867 = vld [vmem:[%s1 + $0x1ec] sm:$0xf]
        %v868 = vld [vmem:[%s1 + $0x1f0] sm:$0xf]
        %v869 = vld [vmem:[%s1 + $0x1f4] sm:$0xf]
        %v870 = vld [vmem:[%s1 + $0x1f8] sm:$0xf]
        %v871 = vld [vmem:[%s1 + $0x1fc] sm:$0xf]
        %v872 = vld [vmem:[%s1 + $0x200] sm:$0xf]
        %v873 = vld [vmem:[%s1 + $0x204] sm:$0xf]
        %v874 = vld [vmem:[%s1 + $0x208] sm:$0xf]
        %v875 = vld [vmem:[%s1 + $0x20c] sm:$0xf]
        %v876 = vld [vmem:[%s1 + $0x210] sm:$0xf]
        %v877 = vld [vmem:[%s1 + $0x214] sm:$0xf]
        %v878 = vld [vmem:[%s1 + $0x218] sm:$0xf]
        %v879 = vld [vmem:[%s1 + $0x21c] sm:$0xf]
        %v880 = vld [vmem:[%s1 + $0x220] sm:$0xf]
        %v881 = vld [vmem:[%s1 + $0x224] sm:$0xf]
        %v882 = vld [vmem:[%s1 + $0x228] sm:$0xf]
        %v883 = vld [vmem:[%s1 + $0x22c] sm:$0xf]
        %v884 = vld [vmem:[%s1 + $0x230] sm:$0xf]
        %v885 = vld [vmem:[%s1 + $0x234] sm:$0xf]
        %v886 = vld [vmem:[%s1 + $0x238] sm:$0xf]
        %v887 = vld [vmem:[%s1 + $0x23c] sm:$0xf]
        %v888 = vld [vmem:[%s1 + $0x240] sm:$0xf]
        %v889 = vld [vmem:[%s1 + $0x244] sm:$0xf]
        %v890 = vld [vmem:[%s1 + $0x248] sm:$0xf]
        %v891 = vld [vmem:[%s1 + $0x24c] sm:$0xf]
        %v892 = vld [vmem:[%s1 + $0x250] sm:$0xf]
        %v893 = vld [vmem:[%s1 + $0x254] sm:$0xf]
        %v894 = vld [vmem:[%s1 + $0x258] sm:$0xf]
        %v895 = vld [vmem:[%s1 + $0x25c] sm:$0xf]
        %v896 = vld [vmem:[%s1 + $0x260] sm:$0xf]
        %v897 = vld [vmem:[%s1 + $0x264] sm:$0xf]
        %v898 = vld [vmem:[%s1 + $0x268] sm:$0xf]
        %v899 = vld [vmem:[%s1 + $0x26c] sm:$0xf]
        %v900 = vld [vmem:[%s1 + $0x270] sm:$0xf]
        %v901 = vld [vmem:[%s1 + $0x274] sm:$0xf]
        %v902 = vld [vmem:[%s1 + $0x278] sm:$0xf]
        %v903 = vld [vmem:[%s1 + $0x27c] sm:$0xf]
        %v904 = vld [vmem:[%s1 + $0x280] sm:$0xf]
        %v905 = vld [vmem:[%s1 + $0x284] sm:$0xf]
        %v906 = vld [vmem:[%s1 + $0x288] sm:$0xf]
        %v907 = vld [vmem:[%s1 + $0x28c] sm:$0xf]
        %v908 = vld [vmem:[%s1 + $0x290] sm:$0xf]
        %v909 = vld [vmem:[%s1 + $0x294] sm:$0xf]
        %v910 = vld [vmem:[%s1 + $0x298] sm:$0xf]
        %v911 = vld [vmem:[%s1 + $0x29c] sm:$0xf]
        %v912 = vld [vmem:[%s1 + $0x2a0] sm:$0xf]
        %v913 = vld [vmem:[%s1 + $0x2a4] sm:$0xf]
        %v914 = vld [vmem:[%s1 + $0x2a8] sm:$0xf]
        %v915 = vld [vmem:[%s1 + $0x2ac] sm:$0xf]
        %v916 = vld [vmem:[%s1 + $0x2b0] sm:$0xf]
        %v917 = vld [vmem:[%s1 + $0x2b4] sm:$0xf]
        %v918 = vld [vmem:[%s1 + $0x2b8] sm:$0xf]
        %v919 = vld [vmem:[%s1 + $0x2bc] sm:$0xf]
        %v920 = vld [vmem:[%s1 + $0x2c0] sm:$0xf]
        %v921 = vld [vmem:[%s1 + $0x2c4] sm:$0xf]
        %v922 = vld [vmem:[%s1 + $0x2c8] sm:$0xf]
        %v923 = vld [vmem:[%s1 + $0x2cc] sm:$0xf]
        %v924 = vld [vmem:[%s1 + $0x2d0] sm:$0xf]
        %v925 = vld [vmem:[%s1 + $0x2d4] sm:$0xf]
        %v926 = vld [vmem:[%s1 + $0x2d8] sm:$0xf]
        %v927 = vld [vmem:[%s1 + $0x2dc] sm:$0xf]
        %v928 = vld [vmem:[%s1 + $0x2e0] sm:$0xf]
        %v929 = vld [vmem:[%s1 + $0x2e4] sm:$0xf]
        %v930 = vld [vmem:[%s1 + $0x2e8] sm:$0xf]
        %v931 = vld [vmem:[%s1 + $0x2ec] sm:$0xf]
        %v932 = vld [vmem:[%s1 + $0x2f0] sm:$0xf]
        %v933 = vld [vmem:[%s1 + $0x2f4] sm:$0xf]
        %v934 = vld [vmem:[%s1 + $0x2f8] sm:$0xf]
        %v935 = vld [vmem:[%s1 + $0x2fc] sm:$0xf]
        %v936 = vld [vmem:[%s1 + $0x300] sm:$0xf]
        %v937 = vld [vmem:[%s1 + $0x304] sm:$0xf]
        %v938 = vld [vmem:[%s1 + $0x308] sm:$0xf]
        %v939 = vld [vmem:[%s1 + $0x30c] sm:$0xf]
        %v940 = vld [vmem:[%s1 + $0x310] sm:$0xf]
        %v941 = vld [vmem:[%s1 + $0x314] sm:$0xf]
        %v942 = vld [vmem:[%s1 + $0x318] sm:$0xf]
        %v943 = vld [vmem:[%s1 + $0x31c] sm:$0xf]
        %v944 = vld [vmem:[%s1 + $0x320] sm:$0xf]
        %v945 = vld [vmem:[%s1 + $0x324] sm:$0xf]
        %v946 = vld [vmem:[%s1 + $0x328] sm:$0xf]
        %v947 = vld [vmem:[%s1 + $0x32c] sm:$0xf]
        %v948 = vld [vmem:[%s1 + $0x330] sm:$0xf]
        %v949 = vld [vmem:[%s1 + $0x334] sm:$0xf]
        %v950 = vld [vmem:[%s1 + $0x338] sm:$0xf]
        %v951 = vld [vmem:[%s1 + $0x33c] sm:$0xf]
        %v952 = vld [vmem:[%s1 + $0x340] sm:$0xf]
        %v953 = vld [vmem:[%s1 + $0x344] sm:$0xf]
        %v954 = vld [vmem:[%s1 + $0x348] sm:$0xf]
        %v955 = vld [vmem:[%s1 + $0x34c] sm:$0xf]
        %v956 = vld [vmem:[%s1 + $0x350] sm:$0xf]
        %v957 = vld [vmem:[%s1 + $0x354] sm:$0xf]
        %v958 = vld [vmem:[%s1 + $0x358] sm:$0xf]
        %v959 = vld [vmem:[%s1 + $0x35c] sm:$0xf]
        %v960 = vld [vmem:[%s1 + $0x360] sm:$0xf]
        %v961 = vld [vmem:[%s1 + $0x364] sm:$0xf]
        %v962 = vld [vmem:[%s1 + $0x368] sm:$0xf]
        %v963 = vld [vmem:[%s1 + $0x36c] sm:$0xf]
        %v964 = vld [vmem:[%s1 + $0x370] sm:$0xf]
        %v965 = vld [vmem:[%s1 + $0x374] sm:$0xf]
        %v966 = vld [vmem:[%s1 + $0x378] sm:$0xf]
        %v967 = vld [vmem:[%s1 + $0x37c] sm:$0xf]
        %v968 = vld [vmem:[%s1 + $0x380] sm:$0xf]
        %v969 = vld [vmem:[%s1 + $0x384] sm:$0xf]
        %v970 = vld [vmem:[%s1 + $0x388] sm:$0xf]
        %v971 = vld [vmem:[%s1 + $0x38c] sm:$0xf]
        %v972 = vld [vmem:[%s1 + $0x390] sm:$0xf]
        %v973 = vld [vmem:[%s1 + $0x394] sm:$0xf]
        %v974 = vld [vmem:[%s1 + $0x398] sm:$0xf]
        %v975 = vld [vmem:[%s1 + $0x39c] sm:$0xf]
        %v976 = vld [vmem:[%s1 + $0x3a0] sm:$0xf]
        %v977 = vld [vmem:[%s1 + $0x3a4] sm:$0xf]
        %v978 = vld [vmem:[%s1 + $0x3a8] sm:$0xf]
        %v979 = vld [vmem:[%s1 + $0x3ac] sm:$0xf]
        %v980 = vld [vmem:[%s1 + $0x3b0] sm:$0xf]
        %v981 = vld [vmem:[%s1 + $0x3b4] sm:$0xf]
        %v982 = vld [vmem:[%s1 + $0x3b8] sm:$0xf]
        %v983 = vld [vmem:[%s1 + $0x3bc] sm:$0xf]
        %v984 = vld [vmem:[%s1 + $0x3c0] sm:$0xf]
        %v985 = vld [vmem:[%s1 + $0x3c4] sm:$0xf]
        %v986 = vld [vmem:[%s1 + $0x3c8] sm:$0xf]
        %v987 = vld [vmem:[%s1 + $0x3cc] sm:$0xf]
        %v988 = vld [vmem:[%s1 + $0x3d0] sm:$0xf]
        %v989 = vld [vmem:[%s1 + $0x3d4] sm:$0xf]
        %v990 = vld [vmem:[%s1 + $0x3d8] sm:$0xf]
        %v991 = vld [vmem:[%s1 + $0x3dc] sm:$0xf]
        %v992 = vld [vmem:[%s1 + $0x3e0] sm:$0xf]
        %v993 = vld [vmem:[%s1 + $0x3e4] sm:$0xf]
        %v994 = vld [vmem:[%s1 + $0x3e8] sm:$0xf]
        %v995 = vld [vmem:[%s1 + $0x3ec] sm:$0xf]
        %v996 = vld [vmem:[%s1 + $0x3f0] sm:$0xf]
        %v997 = vld [vmem:[%s1 + $0x3f4] sm:$0xf]
        %v998 = vld [vmem:[%s1 + $0x3f8] sm:$0xf]
        %v999 = vld [vmem:[%s1 + $0x3fc] sm:$0xf]
        %v1000 = vld [vmem:[%s1 + $0x400] sm:$0xf]
        %v1001 = vld [vmem:[%s1 + $0x404] sm:$0xf]
        %v1002 = vld [vmem:[%s1 + $0x408] sm:$0xf]
        %v1003 = vld [vmem:[%s1 + $0x40c] sm:$0xf]
        %v1004 = vld [vmem:[%s1 + $0x410] sm:$0xf]
        %v1005 = vld [vmem:[%s1 + $0x414] sm:$0xf]
        %v1006 = vld [vmem:[%s1 + $0x418] sm:$0xf]
        %v1007 = vld [vmem:[%s1 + $0x41c] sm:$0xf]
        %v1008 = vld [vmem:[%s1 + $0x420] sm:$0xf]
        %v1009 = vld [vmem:[%s1 + $0x424] sm:$0xf]
        %v1010 = vld [vmem:[%s1 + $0x428] sm:$0xf]
        %v1011 = vld [vmem:[%s1 + $0x42c] sm:$0xf]
        %v1012 = vld [vmem:[%s1 + $0x430] sm:$0xf]
        %v1013 = vld [vmem:[%s1 + $0x434] sm:$0xf]
        %v1014 = vld [vmem:[%s1 + $0x438] sm:$0xf]
        %v1015 = vld [vmem:[%s1 + $0x43c] sm:$0xf]
        %v1016 = vld [vmem:[%s1 + $0x440] sm:$0xf]
        %v1017 = vld [vmem:[%s1 + $0x444] sm:$0xf]
        %v1018 = vld [vmem:[%s1 + $0x448] sm:$0xf]
        %v1019 = vld [vmem:[%s1 + $0x44c] sm:$0xf]
        %v1020 = vld [vmem:[%s1 + $0x450] sm:$0xf]
        %v1021 = vld [vmem:[%s1 + $0x454] sm:$0xf]
        %v1022 = vld [vmem:[%s1 + $0x458] sm:$0xf]
        %v1023 = vld [vmem:[%s1 + $0x45c] sm:$0xf]
        %v1024 = vld [vmem:[%s1 + $0x460] sm:$0xf]
        %v1025 = vld [vmem:[%s1 + $0x464] sm:$0xf]
        %v1026 = vld [vmem:[%s1 + $0x468] sm:$0xf]
        %v1027 = vld [vmem:[%s1 + $0x46c] sm:$0xf]
        %v1028 = vld [vmem:[%s1 + $0x470] sm:$0xf]
        %v1029 = vld [vmem:[%s1 + $0x474] sm:$0xf]
        %v1030 = vld [vmem:[%s1 + $0x478] sm:$0xf]
        %v1031 = vld [vmem:[%s1 + $0x47c] sm:$0xf]
        %v1032 = vld [vmem:[#allocation5] sm:$0x1]
        %v1034 = vlaneseq
        %v1035 = vshrl.u32 %v1034, 7
        %v1036 = vsub.s32 0, %v1035
        %v1037 = vrot.slane %v1032, %v1036
        %v1327 = vunpack.c.l.b16 %v744
        %v1328 = vunpack.c.l.b16 %v745
        %v1329 = vunpack.c.l.b16 %v746
        %v1330 = vunpack.c.l.b16 %v747
        %v1331 = vunpack.c.l.b16 %v748
        %v1332 = vunpack.c.l.b16 %v749
        %v1333 = vunpack.c.l.b16 %v750
        %v1334 = vunpack.c.l.b16 %v751
        %v1335 = vunpack.c.l.b16 %v752
        %v1336 = vunpack.c.l.b16 %v753
        %v1337 = vunpack.c.l.b16 %v754
        %v1338 = vunpack.c.l.b16 %v755
        %v1339 = vunpack.c.l.b16 %v756
        %v1340 = vunpack.c.l.b16 %v757
        %v1341 = vunpack.c.l.b16 %v758
        %v1342 = vunpack.c.l.b16 %v759
        %v1343 = vunpack.c.l.b16 %v760
        %v1344 = vunpack.c.l.b16 %v761
        %v1345 = vunpack.c.l.b16 %v762
        %v1346 = vunpack.c.l.b16 %v763
        %v1347 = vunpack.c.l.b16 %v764
        %v1348 = vunpack.c.l.b16 %v765
        %v1349 = vunpack.c.l.b16 %v766
        %v1350 = vunpack.c.l.b16 %v767
        %v1351 = vunpack.c.l.b16 %v768
        %v1352 = vunpack.c.l.b16 %v769
        %v1353 = vunpack.c.l.b16 %v770
        %v1354 = vunpack.c.l.b16 %v771
        %v1355 = vunpack.c.l.b16 %v772
        %v1356 = vunpack.c.l.b16 %v773
        %v1357 = vunpack.c.l.b16 %v774
        %v1358 = vunpack.c.l.b16 %v775
        %v1359 = vunpack.c.l.b16 %v776
        %v1360 = vunpack.c.l.b16 %v777
        %v1361 = vunpack.c.l.b16 %v778
        %v1362 = vunpack.c.l.b16 %v779
        %v1363 = vunpack.c.l.b16 %v780
        %v1364 = vunpack.c.l.b16 %v781
        %v1365 = vunpack.c.l.b16 %v782
        %v1366 = vunpack.c.l.b16 %v783
        %v1367 = vunpack.c.l.b16 %v784
        %v1368 = vunpack.c.l.b16 %v785
        %v1369 = vunpack.c.l.b16 %v786
        %v1370 = vunpack.c.l.b16 %v787
        %v1371 = vunpack.c.l.b16 %v788
        %v1372 = vunpack.c.l.b16 %v789
        %v1373 = vunpack.c.l.b16 %v790
        %v1374 = vunpack.c.l.b16 %v791
        %v1375 = vunpack.c.l.b16 %v792
        %v1376 = vunpack.c.l.b16 %v793
        %v1377 = vunpack.c.l.b16 %v794
        %v1378 = vunpack.c.l.b16 %v795
        %v1379 = vunpack.c.l.b16 %v796
        %v1380 = vunpack.c.l.b16 %v797
        %v1381 = vunpack.c.l.b16 %v798
        %v1382 = vunpack.c.l.b16 %v799
        %v1383 = vunpack.c.l.b16 %v800
        %v1384 = vunpack.c.l.b16 %v801
        %v1385 = vunpack.c.l.b16 %v802
        %v1386 = vunpack.c.l.b16 %v803
        %v1387 = vunpack.c.l.b16 %v804
        %v1388 = vunpack.c.l.b16 %v805
        %v1389 = vunpack.c.l.b16 %v806
        %v1390 = vunpack.c.l.b16 %v807
        %v1391 = vunpack.c.l.b16 %v808
        %v1392 = vunpack.c.l.b16 %v809
        %v1393 = vunpack.c.l.b16 %v810
        %v1394 = vunpack.c.l.b16 %v811
        %v1395 = vunpack.c.l.b16 %v812
        %v1396 = vunpack.c.l.b16 %v813
        %v1397 = vunpack.c.l.b16 %v814
        %v1398 = vunpack.c.l.b16 %v815
        %v1399 = vunpack.c.l.b16 %v816
        %v1400 = vunpack.c.l.b16 %v817
        %v1401 = vunpack.c.l.b16 %v818
        %v1402 = vunpack.c.l.b16 %v819
        %v1403 = vunpack.c.l.b16 %v820
        %v1404 = vunpack.c.l.b16 %v821
        %v1405 = vunpack.c.l.b16 %v822
        %v1406 = vunpack.c.l.b16 %v823
        %v1407 = vunpack.c.l.b16 %v824
        %v1408 = vunpack.c.l.b16 %v825
        %v1409 = vunpack.c.l.b16 %v826
        %v1410 = vunpack.c.l.b16 %v827
        %v1411 = vunpack.c.l.b16 %v828
        %v1412 = vunpack.c.l.b16 %v829
        %v1413 = vunpack.c.l.b16 %v830
        %v1414 = vunpack.c.l.b16 %v831
        %v1415 = vunpack.c.l.b16 %v832
        %v1416 = vunpack.c.l.b16 %v833
        %v1417 = vunpack.c.l.b16 %v834
        %v1418 = vunpack.c.l.b16 %v835
        %v1419 = vunpack.c.l.b16 %v836
        %v1420 = vunpack.c.l.b16 %v837
        %v1421 = vunpack.c.l.b16 %v838
        %v1422 = vunpack.c.l.b16 %v839
        %v1423 = vunpack.c.l.b16 %v840
        %v1424 = vunpack.c.l.b16 %v841
        %v1425 = vunpack.c.l.b16 %v842
        %v1426 = vunpack.c.l.b16 %v843
        %v1427 = vunpack.c.l.b16 %v844
        %v1428 = vunpack.c.l.b16 %v845
        %v1429 = vunpack.c.l.b16 %v846
        %v1430 = vunpack.c.l.b16 %v847
        %v1431 = vunpack.c.l.b16 %v848
        %v1432 = vunpack.c.l.b16 %v849
        %v1433 = vunpack.c.l.b16 %v850
        %v1434 = vunpack.c.l.b16 %v851
        %v1435 = vunpack.c.l.b16 %v852
        %v1436 = vunpack.c.l.b16 %v853
        %v1437 = vunpack.c.l.b16 %v854
        %v1438 = vunpack.c.l.b16 %v855
        %v1439 = vunpack.c.l.b16 %v856
        %v1440 = vunpack.c.l.b16 %v857
        %v1441 = vunpack.c.l.b16 %v858
        %v1442 = vunpack.c.l.b16 %v859
        %v1443 = vunpack.c.l.b16 %v860
        %v1444 = vunpack.c.l.b16 %v861
        %v1445 = vunpack.c.l.b16 %v862
        %v1446 = vunpack.c.l.b16 %v863
        %v1447 = vunpack.c.l.b16 %v864
        %v1448 = vunpack.c.l.b16 %v865
        %v1449 = vunpack.c.l.b16 %v866
        %v1450 = vunpack.c.l.b16 %v867
        %v1451 = vunpack.c.l.b16 %v868
        %v1452 = vunpack.c.l.b16 %v869
        %v1453 = vunpack.c.l.b16 %v870
        %v1454 = vunpack.c.l.b16 %v871
        %v1455 = vunpack.c.l.b16 %v872
        %v1456 = vunpack.c.l.b16 %v873
        %v1457 = vunpack.c.l.b16 %v874
        %v1458 = vunpack.c.l.b16 %v875
        %v1459 = vunpack.c.l.b16 %v876
        %v1460 = vunpack.c.l.b16 %v877
        %v1461 = vunpack.c.l.b16 %v878
        %v1462 = vunpack.c.l.b16 %v879
        %v1463 = vunpack.c.l.b16 %v880
        %v1464 = vunpack.c.l.b16 %v881
        %v1465 = vunpack.c.l.b16 %v882
        %v1466 = vunpack.c.l.b16 %v883
        %v1467 = vunpack.c.l.b16 %v884
        %v1468 = vunpack.c.l.b16 %v885
        %v1469 = vunpack.c.l.b16 %v886
        %v1470 = vunpack.c.l.b16 %v887
        %v1471 = vunpack.c.l.b16 %v888
        %v1472 = vunpack.c.l.b16 %v889
        %v1473 = vunpack.c.l.b16 %v890
        %v1474 = vunpack.c.l.b16 %v891
        %v1475 = vunpack.c.l.b16 %v892
        %v1476 = vunpack.c.l.b16 %v893
        %v1477 = vunpack.c.l.b16 %v894
        %v1478 = vunpack.c.l.b16 %v895
        %v1479 = vunpack.c.l.b16 %v896
        %v1480 = vunpack.c.l.b16 %v897
        %v1481 = vunpack.c.l.b16 %v898
        %v1482 = vunpack.c.l.b16 %v899
        %v1483 = vunpack.c.l.b16 %v900
        %v1484 = vunpack.c.l.b16 %v901
        %v1485 = vunpack.c.l.b16 %v902
        %v1486 = vunpack.c.l.b16 %v903
        %v1487 = vunpack.c.l.b16 %v904
        %v1488 = vunpack.c.l.b16 %v905
        %v1489 = vunpack.c.l.b16 %v906
        %v1490 = vunpack.c.l.b16 %v907
        %v1491 = vunpack.c.l.b16 %v908
        %v1492 = vunpack.c.l.b16 %v909
        %v1493 = vunpack.c.l.b16 %v910
        %v1494 = vunpack.c.l.b16 %v911
        %v1495 = vunpack.c.l.b16 %v912
        %v1496 = vunpack.c.l.b16 %v913
        %v1497 = vunpack.c.l.b16 %v914
        %v1498 = vunpack.c.l.b16 %v915
        %v1499 = vunpack.c.l.b16 %v916
        %v1500 = vunpack.c.l.b16 %v917
        %v1501 = vunpack.c.l.b16 %v918
        %v1502 = vunpack.c.l.b16 %v919
        %v1503 = vunpack.c.l.b16 %v920
        %v1504 = vunpack.c.l.b16 %v921
        %v1505 = vunpack.c.l.b16 %v922
        %v1506 = vunpack.c.l.b16 %v923
        %v1507 = vunpack.c.l.b16 %v924
        %v1508 = vunpack.c.l.b16 %v925
        %v1509 = vunpack.c.l.b16 %v926
        %v1510 = vunpack.c.l.b16 %v927
        %v1511 = vunpack.c.l.b16 %v928
        %v1512 = vunpack.c.l.b16 %v929
        %v1513 = vunpack.c.l.b16 %v930
        %v1514 = vunpack.c.l.b16 %v931
        %v1515 = vunpack.c.l.b16 %v932
        %v1516 = vunpack.c.l.b16 %v933
        %v1517 = vunpack.c.l.b16 %v934
        %v1518 = vunpack.c.l.b16 %v935
        %v1519 = vunpack.c.l.b16 %v936
        %v1520 = vunpack.c.l.b16 %v937
        %v1521 = vunpack.c.l.b16 %v938
        %v1522 = vunpack.c.l.b16 %v939
        %v1523 = vunpack.c.l.b16 %v940
        %v1524 = vunpack.c.l.b16 %v941
        %v1525 = vunpack.c.l.b16 %v942
        %v1526 = vunpack.c.l.b16 %v943
        %v1527 = vunpack.c.l.b16 %v944
        %v1528 = vunpack.c.l.b16 %v945
        %v1529 = vunpack.c.l.b16 %v946
        %v1530 = vunpack.c.l.b16 %v947
        %v1531 = vunpack.c.l.b16 %v948
        %v1532 = vunpack.c.l.b16 %v949
        %v1533 = vunpack.c.l.b16 %v950
        %v1534 = vunpack.c.l.b16 %v951
        %v1535 = vunpack.c.l.b16 %v952
        %v1536 = vunpack.c.l.b16 %v953
        %v1537 = vunpack.c.l.b16 %v954
        %v1538 = vunpack.c.l.b16 %v955
        %v1539 = vunpack.c.l.b16 %v956
        %v1540 = vunpack.c.l.b16 %v957
        %v1541 = vunpack.c.l.b16 %v958
        %v1542 = vunpack.c.l.b16 %v959
        %v1543 = vunpack.c.l.b16 %v960
        %v1544 = vunpack.c.l.b16 %v961
        %v1545 = vunpack.c.l.b16 %v962
        %v1546 = vunpack.c.l.b16 %v963
        %v1547 = vunpack.c.l.b16 %v964
        %v1548 = vunpack.c.l.b16 %v965
        %v1549 = vunpack.c.l.b16 %v966
        %v1550 = vunpack.c.l.b16 %v967
        %v1551 = vunpack.c.l.b16 %v968
        %v1552 = vunpack.c.l.b16 %v969
        %v1553 = vunpack.c.l.b16 %v970
        %v1554 = vunpack.c.l.b16 %v971
        %v1555 = vunpack.c.l.b16 %v972
        %v1556 = vunpack.c.l.b16 %v973
        %v1557 = vunpack.c.l.b16 %v974
        %v1558 = vunpack.c.l.b16 %v975
        %v1559 = vunpack.c.l.b16 %v976
        %v1560 = vunpack.c.l.b16 %v977
        %v1561 = vunpack.c.l.b16 %v978
        %v1562 = vunpack.c.l.b16 %v979
        %v1563 = vunpack.c.l.b16 %v980
        %v1564 = vunpack.c.l.b16 %v981
        %v1565 = vunpack.c.l.b16 %v982
        %v1566 = vunpack.c.l.b16 %v983
        %v1567 = vunpack.c.l.b16 %v984
        %v1568 = vunpack.c.l.b16 %v985
        %v1569 = vunpack.c.l.b16 %v986
        %v1570 = vunpack.c.l.b16 %v987
        %v1571 = vunpack.c.l.b16 %v988
        %v1572 = vunpack.c.l.b16 %v989
        %v1573 = vunpack.c.l.b16 %v990
        %v1574 = vunpack.c.l.b16 %v991
        %v1575 = vunpack.c.l.b16 %v992
        %v1576 = vunpack.c.l.b16 %v993
        %v1577 = vunpack.c.l.b16 %v994
        %v1578 = vunpack.c.l.b16 %v995
        %v1579 = vunpack.c.l.b16 %v996
        %v1580 = vunpack.c.l.b16 %v997
        %v1581 = vunpack.c.l.b16 %v998
        %v1582 = vunpack.c.l.b16 %v999
        %v1583 = vunpack.c.l.b16 %v1000
        %v1584 = vunpack.c.l.b16 %v1001
        %v1585 = vunpack.c.l.b16 %v1002
        %v1586 = vunpack.c.l.b16 %v1003
        %v1587 = vunpack.c.l.b16 %v1004
        %v1588 = vunpack.c.l.b16 %v1005
        %v1589 = vunpack.c.l.b16 %v1006
        %v1590 = vunpack.c.l.b16 %v1007
        %v1591 = vunpack.c.l.b16 %v1008
        %v1592 = vunpack.c.l.b16 %v1009
        %v1593 = vunpack.c.l.b16 %v1010
        %v1594 = vunpack.c.l.b16 %v1011
        %v1595 = vunpack.c.l.b16 %v1012
        %v1596 = vunpack.c.l.b16 %v1013
        %v1597 = vunpack.c.l.b16 %v1014
        %v1598 = vunpack.c.l.b16 %v1015
        %v1599 = vunpack.c.l.b16 %v1016
        %v1600 = vunpack.c.l.b16 %v1017
        %v1601 = vunpack.c.l.b16 %v1018
        %v1602 = vunpack.c.l.b16 %v1019
        %v1603 = vunpack.c.l.b16 %v1020
        %v1604 = vunpack.c.l.b16 %v1021
        %v1605 = vunpack.c.l.b16 %v1022
        %v1606 = vunpack.c.l.b16 %v1023
        %v1607 = vunpack.c.l.b16 %v1024
        %v1608 = vunpack.c.l.b16 %v1025
        %v1609 = vunpack.c.l.b16 %v1026
        %v1610 = vunpack.c.l.b16 %v1027
        %v1611 = vunpack.c.l.b16 %v1028
        %v1612 = vunpack.c.l.b16 %v1029
        %v1613 = vunpack.c.l.b16 %v1030
        %v1614 = vunpack.c.l.b16 %v1031
        %v1615 = vpack.c.b16 %v1328, %v1327
        %v1616 = vpack.c.b16 %v1330, %v1329
        %v1617 = vpack.c.b16 %v1332, %v1331
        %v1618 = vpack.c.b16 %v1334, %v1333
        %v1619 = vpack.c.b16 %v1336, %v1335
        %v1620 = vpack.c.b16 %v1338, %v1337
        %v1621 = vpack.c.b16 %v1340, %v1339
        %v1622 = vpack.c.b16 %v1342, %v1341
        %v1623 = vpack.c.b16 %v1344, %v1343
        %v1624 = vpack.c.b16 %v1346, %v1345
        %v1625 = vpack.c.b16 %v1348, %v1347
        %v1626 = vpack.c.b16 %v1350, %v1349
        %v1627 = vpack.c.b16 %v1352, %v1351
        %v1628 = vpack.c.b16 %v1354, %v1353
        %v1629 = vpack.c.b16 %v1356, %v1355
        %v1630 = vpack.c.b16 %v1358, %v1357
        %v1631 = vpack.c.b16 %v1360, %v1359
        %v1632 = vpack.c.b16 %v1362, %v1361
        %v1633 = vpack.c.b16 %v1364, %v1363
        %v1634 = vpack.c.b16 %v1366, %v1365
        %v1635 = vpack.c.b16 %v1368, %v1367
        %v1636 = vpack.c.b16 %v1370, %v1369
        %v1637 = vpack.c.b16 %v1372, %v1371
        %v1638 = vpack.c.b16 %v1374, %v1373
        %v1639 = vpack.c.b16 %v1376, %v1375
        %v1640 = vpack.c.b16 %v1378, %v1377
        %v1641 = vpack.c.b16 %v1380, %v1379
        %v1642 = vpack.c.b16 %v1382, %v1381
        %v1643 = vpack.c.b16 %v1384, %v1383
        %v1644 = vpack.c.b16 %v1386, %v1385
        %v1645 = vpack.c.b16 %v1388, %v1387
        %v1646 = vpack.c.b16 %v1390, %v1389
        %v1647 = vpack.c.b16 %v1392, %v1391
        %v1648 = vpack.c.b16 %v1394, %v1393
        %v1649 = vpack.c.b16 %v1396, %v1395
        %v1650 = vpack.c.b16 %v1398, %v1397
        %v1651 = vpack.c.b16 %v1400, %v1399
        %v1652 = vpack.c.b16 %v1402, %v1401
        %v1653 = vpack.c.b16 %v1404, %v1403
        %v1654 = vpack.c.b16 %v1406, %v1405
        %v1655 = vpack.c.b16 %v1408, %v1407
        %v1656 = vpack.c.b16 %v1410, %v1409
        %v1657 = vpack.c.b16 %v1412, %v1411
        %v1658 = vpack.c.b16 %v1414, %v1413
        %v1659 = vpack.c.b16 %v1416, %v1415
        %v1660 = vpack.c.b16 %v1418, %v1417
        %v1661 = vpack.c.b16 %v1420, %v1419
        %v1662 = vpack.c.b16 %v1422, %v1421
        %v1663 = vpack.c.b16 %v1424, %v1423
        %v1664 = vpack.c.b16 %v1426, %v1425
        %v1665 = vpack.c.b16 %v1428, %v1427
        %v1666 = vpack.c.b16 %v1430, %v1429
        %v1667 = vpack.c.b16 %v1432, %v1431
        %v1668 = vpack.c.b16 %v1434, %v1433
        %v1669 = vpack.c.b16 %v1436, %v1435
        %v1670 = vpack.c.b16 %v1438, %v1437
        %v1671 = vpack.c.b16 %v1440, %v1439
        %v1672 = vpack.c.b16 %v1442, %v1441
        %v1673 = vpack.c.b16 %v1444, %v1443
        %v1674 = vpack.c.b16 %v1446, %v1445
        %v1675 = vpack.c.b16 %v1448, %v1447
        %v1676 = vpack.c.b16 %v1450, %v1449
        %v1677 = vpack.c.b16 %v1452, %v1451
        %v1678 = vpack.c.b16 %v1454, %v1453
        %v1679 = vpack.c.b16 %v1456, %v1455
        %v1680 = vpack.c.b16 %v1458, %v1457
        %v1681 = vpack.c.b16 %v1460, %v1459
        %v1682 = vpack.c.b16 %v1462, %v1461
        %v1683 = vpack.c.b16 %v1464, %v1463
        %v1684 = vpack.c.b16 %v1466, %v1465
        %v1685 = vpack.c.b16 %v1468, %v1467
        %v1686 = vpack.c.b16 %v1470, %v1469
        %v1687 = vpack.c.b16 %v1472, %v1471
        %v1688 = vpack.c.b16 %v1474, %v1473
        %v1689 = vpack.c.b16 %v1476, %v1475
        %v1690 = vpack.c.b16 %v1478, %v1477
        %v1691 = vpack.c.b16 %v1480, %v1479
        %v1692 = vpack.c.b16 %v1482, %v1481
        %v1693 = vpack.c.b16 %v1484, %v1483
        %v1694 = vpack.c.b16 %v1486, %v1485
        %v1695 = vpack.c.b16 %v1488, %v1487
        %v1696 = vpack.c.b16 %v1490, %v1489
        %v1697 = vpack.c.b16 %v1492, %v1491
        %v1698 = vpack.c.b16 %v1494, %v1493
        %v1699 = vpack.c.b16 %v1496, %v1495
        %v1700 = vpack.c.b16 %v1498, %v1497
        %v1701 = vpack.c.b16 %v1500, %v1499
        %v1702 = vpack.c.b16 %v1502, %v1501
        %v1703 = vpack.c.b16 %v1504, %v1503
        %v1704 = vpack.c.b16 %v1506, %v1505
        %v1705 = vpack.c.b16 %v1508, %v1507
        %v1706 = vpack.c.b16 %v1510, %v1509
        %v1707 = vpack.c.b16 %v1512, %v1511
        %v1708 = vpack.c.b16 %v1514, %v1513
        %v1709 = vpack.c.b16 %v1516, %v1515
        %v1710 = vpack.c.b16 %v1518, %v1517
        %v1711 = vpack.c.b16 %v1520, %v1519
        %v1712 = vpack.c.b16 %v1522, %v1521
        %v1713 = vpack.c.b16 %v1524, %v1523
        %v1714 = vpack.c.b16 %v1526, %v1525
        %v1715 = vpack.c.b16 %v1528, %v1527
        %v1716 = vpack.c.b16 %v1530, %v1529
        %v1717 = vpack.c.b16 %v1532, %v1531
        %v1718 = vpack.c.b16 %v1534, %v1533
        %v1719 = vpack.c.b16 %v1536, %v1535
        %v1720 = vpack.c.b16 %v1538, %v1537
        %v1721 = vpack.c.b16 %v1540, %v1539
        %v1722 = vpack.c.b16 %v1542, %v1541
        %v1723 = vpack.c.b16 %v1544, %v1543
        %v1724 = vpack.c.b16 %v1546, %v1545
        %v1725 = vpack.c.b16 %v1548, %v1547
        %v1726 = vpack.c.b16 %v1550, %v1549
        %v1727 = vpack.c.b16 %v1552, %v1551
        %v1728 = vpack.c.b16 %v1554, %v1553
        %v1729 = vpack.c.b16 %v1556, %v1555
        %v1730 = vpack.c.b16 %v1558, %v1557
        %v1731 = vpack.c.b16 %v1560, %v1559
        %v1732 = vpack.c.b16 %v1562, %v1561
        %v1733 = vpack.c.b16 %v1564, %v1563
        %v1734 = vpack.c.b16 %v1566, %v1565
        %v1735 = vpack.c.b16 %v1568, %v1567
        %v1736 = vpack.c.b16 %v1570, %v1569
        %v1737 = vpack.c.b16 %v1572, %v1571
        %v1738 = vpack.c.b16 %v1574, %v1573
        %v1739 = vpack.c.b16 %v1576, %v1575
        %v1740 = vpack.c.b16 %v1578, %v1577
        %v1741 = vpack.c.b16 %v1580, %v1579
        %v1742 = vpack.c.b16 %v1582, %v1581
        %v1743 = vpack.c.b16 %v1584, %v1583
        %v1744 = vpack.c.b16 %v1586, %v1585
        %v1745 = vpack.c.b16 %v1588, %v1587
        %v1746 = vpack.c.b16 %v1590, %v1589
        %v1747 = vpack.c.b16 %v1592, %v1591
        %v1748 = vpack.c.b16 %v1594, %v1593
        %v1749 = vpack.c.b16 %v1596, %v1595
        %v1750 = vpack.c.b16 %v1598, %v1597
        %v1751 = vpack.c.b16 %v1600, %v1599
        %v1752 = vpack.c.b16 %v1602, %v1601
        %v1753 = vpack.c.b16 %v1604, %v1603
        %v1754 = vpack.c.b16 %v1606, %v1605
        %v1755 = vpack.c.b16 %v1608, %v1607
        %v1756 = vpack.c.b16 %v1610, %v1609
        %v1757 = vpack.c.b16 %v1612, %v1611
        %v1758 = vpack.c.b16 %v1614, %v1613
        %1903 = vmatprep.subr.bf16.mxu0 0
        %1904 = vmatpush1.bf16.msra.mxu0 %v1622
        %1905 = vmatprep.subr.bf16.mxu0 0
        %1906 = vmatpush1.bf16.msra.mxu0 %v1621
        %1907 = vmatprep.subr.bf16.mxu0 0
        %1908 = vmatpush1.bf16.msra.mxu0 %v1620
        %1909 = vmatprep.subr.bf16.mxu0 0
        %1910 = vmatpush1.bf16.msra.mxu0 %v1619
        %1911 = vmatprep.subr.bf16.mxu0 0
        %1912 = vmatpush1.bf16.msra.mxu0 %v1618
        %1913 = vmatprep.subr.bf16.mxu0 0
        %1914 = vmatpush1.bf16.msra.mxu0 %v1617
        %1915 = vmatprep.subr.bf16.mxu0 0
        %1916 = vmatpush1.bf16.msra.mxu0 %v1616
        %1917 = vmatprep.subr.bf16.mxu0 0
        %1918 = vmatpush1.bf16.msra.mxu0 %v1615
        %1919 = vmatprep.subr.bf16.mxu0 0
        %1920 = vmatpush2.bf16.msra.mxu0 %v1630
        %1921 = vmatprep.subr.bf16.mxu0 0
        %1922 = vmatpush2.bf16.msra.mxu0 %v1629
        %1923 = vmatprep.subr.bf16.mxu0 0
        %1924 = vmatpush2.bf16.msra.mxu0 %v1628
        %1925 = vmatprep.subr.bf16.mxu0 0
        %1926 = vmatpush2.bf16.msra.mxu0 %v1627
        %1927 = vmatprep.subr.bf16.mxu0 0
        %1928 = vmatpush2.bf16.msra.mxu0 %v1626
        %1929 = vmatprep.subr.bf16.mxu0 0
        %1930 = vmatpush2.bf16.msra.mxu0 %v1625
        %1931 = vmatprep.subr.bf16.mxu0 0
        %1932 = vmatpush2.bf16.msra.mxu0 %v1624
        %1933 = vmatprep.subr.bf16.mxu0 0
        %1934 = vmatpush2.bf16.msra.mxu0 %v1623
        %1935 = vmatprep.mubr.bf16.mxu0 %v583
        %1936 = vmatmul.mubr.bf16.gmra.mxu0 %v582
        %v1937 = vpop.f32.mrf.mxu0
        %v1938 = vadd.f32 %v1037, %v1937
        %v1939 = vpop.f32.mrf.mxu0
        %v1940 = vpop.f32.mrf.mxu0
        %v1941 = vadd.f32 %v1037, %v1940
        %v1942 = vpop.f32.mrf.mxu0
        %1943 = vmatprep.mubr.bf16.mxu0 %v601
        %1944 = vmatmul.mubr.bf16.gmra.mxu0 %v600
        %v1945 = vpop.f32.mrf.mxu0
        %v1946 = vadd.f32 %v1037, %v1945
        %v1947 = vpop.f32.mrf.mxu0
        %v1948 = vpop.f32.mrf.mxu0
        %v1949 = vadd.f32 %v1037, %v1948
        %v1950 = vpop.f32.mrf.mxu0
        %1951 = vmatprep.mubr.bf16.mxu0 %v619
        %1952 = vmatmul.mubr.bf16.gmra.mxu0 %v618
        %v1953 = vpop.f32.mrf.mxu0
        %v1954 = vadd.f32 %v1037, %v1953
        %v1955 = vpop.f32.mrf.mxu0
        %v1956 = vpop.f32.mrf.mxu0
        %v1957 = vadd.f32 %v1037, %v1956
        %v1958 = vpop.f32.mrf.mxu0
        %1959 = vmatprep.mubr.bf16.mxu0 %v637
        %1960 = vmatmul.mubr.bf16.gmra.mxu0 %v636
        %v1961 = vpop.f32.mrf.mxu0
        %v1962 = vadd.f32 %v1037, %v1961
        %v1963 = vpop.f32.mrf.mxu0
        %v1964 = vpop.f32.mrf.mxu0
        %v1965 = vadd.f32 %v1037, %v1964
        %v1966 = vpop.f32.mrf.mxu0
        %1967 = vmatprep.mubr.bf16.mxu0 %v655
        %1968 = vmatmul.mubr.bf16.gmra.mxu0 %v654
        %v1969 = vpop.f32.mrf.mxu0
        %v1970 = vadd.f32 %v1037, %v1969
        %v1971 = vpop.f32.mrf.mxu0
        %v1972 = vpop.f32.mrf.mxu0
        %v1973 = vadd.f32 %v1037, %v1972
        %v1974 = vpop.f32.mrf.mxu0
        %1975 = vmatprep.mubr.bf16.mxu0 %v673
        %1976 = vmatmul.mubr.bf16.gmra.mxu0 %v672
        %v1977 = vpop.f32.mrf.mxu0
        %v1978 = vadd.f32 %v1037, %v1977
        %v1979 = vpop.f32.mrf.mxu0
        %v1980 = vpop.f32.mrf.mxu0
        %v1981 = vadd.f32 %v1037, %v1980
        %v1982 = vpop.f32.mrf.mxu0
        %1983 = vmatprep.mubr.bf16.mxu0 %v691
        %1984 = vmatmul.mubr.bf16.gmra.mxu0 %v690
        %v1985 = vpop.f32.mrf.mxu0
        %v1986 = vadd.f32 %v1037, %v1985
        %v1987 = vpop.f32.mrf.mxu0
        %v1988 = vpop.f32.mrf.mxu0
        %v1989 = vadd.f32 %v1037, %v1988
        %v1990 = vpop.f32.mrf.mxu0
        %1991 = vmatprep.mubr.bf16.mxu0 %v709
        %1992 = vmatmul.mubr.bf16.gmra.mxu0 %v708
        %v1993 = vpop.f32.mrf.mxu0
        %v1994 = vadd.f32 %v1037, %v1993
        %v1995 = vpop.f32.mrf.mxu0
        %v1996 = vpop.f32.mrf.mxu0
        %v1997 = vadd.f32 %v1037, %v1996
        %v1998 = vpop.f32.mrf.mxu0
        %1999 = vmatprep.mubr.bf16.mxu0 %v727
        %2000 = vmatmul.mubr.bf16.gmra.mxu0 %v726
        %v2001 = vpop.f32.mrf.mxu0
        %v2002 = vadd.f32 %v1037, %v2001
        %v2003 = vpop.f32.mrf.mxu0
        %v2004 = vpop.f32.mrf.mxu0
        %v2005 = vpop.f32.mrf.mxu0
        %2006 = vdwg.mxu0
        %2007 = vmatprep.subr.bf16.mxu0 0
        %2008 = vmatpush1.bf16.msra.mxu0 %v1638
        %2009 = vmatprep.subr.bf16.mxu0 0
        %2010 = vmatpush1.bf16.msra.mxu0 %v1637
        %2011 = vmatprep.subr.bf16.mxu0 0
        %2012 = vmatpush1.bf16.msra.mxu0 %v1636
        %2013 = vmatprep.subr.bf16.mxu0 0
        %2014 = vmatpush1.bf16.msra.mxu0 %v1635
        %2015 = vmatprep.subr.bf16.mxu0 0
        %2016 = vmatpush1.bf16.msra.mxu0 %v1634
        %2017 = vmatprep.subr.bf16.mxu0 0
        %2018 = vmatpush1.bf16.msra.mxu0 %v1633
        %2019 = vmatprep.subr.bf16.mxu0 0
        %2020 = vmatpush1.bf16.msra.mxu0 %v1632
        %2021 = vmatprep.subr.bf16.mxu0 0
        %2022 = vmatpush1.bf16.msra.mxu0 %v1631
        %2023 = vmatprep.subr.bf16.mxu0 0
        %2024 = vmatpush2.bf16.msra.mxu0 %v1646
        %2025 = vmatprep.subr.bf16.mxu0 0
        %2026 = vmatpush2.bf16.msra.mxu0 %v1645
        %2027 = vmatprep.subr.bf16.mxu0 0
        %2028 = vmatpush2.bf16.msra.mxu0 %v1644
        %2029 = vmatprep.subr.bf16.mxu0 0
        %2030 = vmatpush2.bf16.msra.mxu0 %v1643
        %2031 = vmatprep.subr.bf16.mxu0 0
        %2032 = vmatpush2.bf16.msra.mxu0 %v1642
        %2033 = vmatprep.subr.bf16.mxu0 0
        %2034 = vmatpush2.bf16.msra.mxu0 %v1641
        %2035 = vmatprep.subr.bf16.mxu0 0
        %2036 = vmatpush2.bf16.msra.mxu0 %v1640
        %2037 = vmatprep.subr.bf16.mxu0 0
        %2038 = vmatpush2.bf16.msra.mxu0 %v1639
        %2039 = vmatprep.mubr.bf16.mxu0 %v585
        %2040 = vmatmul.mubr.bf16.gmra.mxu0 %v584
        %v2041 = vpop.f32.mrf.mxu0
        %v2042 = vadd.f32 %v1938, %v2041
        %v2043 = vpop.f32.mrf.mxu0
        %v2044 = vpop.f32.mrf.mxu0
        %v2045 = vadd.f32 %v1941, %v2044
        %v2046 = vpop.f32.mrf.mxu0
        %2047 = vmatprep.mubr.bf16.mxu0 %v603
        %2048 = vmatmul.mubr.bf16.gmra.mxu0 %v602
        %v2049 = vpop.f32.mrf.mxu0
        %v2050 = vadd.f32 %v1946, %v2049
        %v2051 = vpop.f32.mrf.mxu0
        %v2052 = vpop.f32.mrf.mxu0
        %v2053 = vadd.f32 %v1949, %v2052
        %v2054 = vpop.f32.mrf.mxu0
        %2055 = vmatprep.mubr.bf16.mxu0 %v621
        %2056 = vmatmul.mubr.bf16.gmra.mxu0 %v620
        %v2057 = vpop.f32.mrf.mxu0
        %v2058 = vadd.f32 %v1954, %v2057
        %v2059 = vpop.f32.mrf.mxu0
        %v2060 = vpop.f32.mrf.mxu0
        %v2061 = vadd.f32 %v1957, %v2060
        %v2062 = vpop.f32.mrf.mxu0
        %2063 = vmatprep.mubr.bf16.mxu0 %v639
        %2064 = vmatmul.mubr.bf16.gmra.mxu0 %v638
        %v2065 = vpop.f32.mrf.mxu0
        %v2066 = vadd.f32 %v1962, %v2065
        %v2067 = vpop.f32.mrf.mxu0
        %v2068 = vpop.f32.mrf.mxu0
        %v2069 = vadd.f32 %v1965, %v2068
        %v2070 = vpop.f32.mrf.mxu0
        %2071 = vmatprep.mubr.bf16.mxu0 %v657
        %2072 = vmatmul.mubr.bf16.gmra.mxu0 %v656
        %v2073 = vpop.f32.mrf.mxu0
        %v2074 = vadd.f32 %v1970, %v2073
        %v2075 = vpop.f32.mrf.mxu0
        %v2076 = vpop.f32.mrf.mxu0
        %v2077 = vadd.f32 %v1973, %v2076
        %v2078 = vpop.f32.mrf.mxu0
        %2079 = vmatprep.mubr.bf16.mxu0 %v675
        %2080 = vmatmul.mubr.bf16.gmra.mxu0 %v674
        %v2081 = vpop.f32.mrf.mxu0
        %v2082 = vadd.f32 %v1978, %v2081
        %v2083 = vpop.f32.mrf.mxu0
        %v2084 = vpop.f32.mrf.mxu0
        %v2085 = vadd.f32 %v1981, %v2084
        %v2086 = vpop.f32.mrf.mxu0
        %2087 = vmatprep.mubr.bf16.mxu0 %v693
        %2088 = vmatmul.mubr.bf16.gmra.mxu0 %v692
        %v2089 = vpop.f32.mrf.mxu0
        %v2090 = vadd.f32 %v1986, %v2089
        %v2091 = vpop.f32.mrf.mxu0
        %v2092 = vpop.f32.mrf.mxu0
        %v2093 = vadd.f32 %v1989, %v2092
        %v2094 = vpop.f32.mrf.mxu0
        %2095 = vmatprep.mubr.bf16.mxu0 %v711
        %2096 = vmatmul.mubr.bf16.gmra.mxu0 %v710
        %v2097 = vpop.f32.mrf.mxu0
        %v2098 = vadd.f32 %v1994, %v2097
        %v2099 = vpop.f32.mrf.mxu0
        %v2100 = vpop.f32.mrf.mxu0
        %v2101 = vadd.f32 %v1997, %v2100
        %v2102 = vpop.f32.mrf.mxu0
        %2103 = vmatprep.mubr.bf16.mxu0 %v729
        %2104 = vmatmul.mubr.bf16.gmra.mxu0 %v728
        %v2105 = vpop.f32.mrf.mxu0
        %v2106 = vadd.f32 %v2002, %v2105
        %v2107 = vpop.f32.mrf.mxu0
        %v2108 = vpop.f32.mrf.mxu0
        %v2109 = vpop.f32.mrf.mxu0
        %2110 = vdwg.mxu0
        %2111 = vmatprep.subr.bf16.mxu0 0
        %2112 = vmatpush1.bf16.msra.mxu0 %v1654
        %2113 = vmatprep.subr.bf16.mxu0 0
        %2114 = vmatpush1.bf16.msra.mxu0 %v1653
        %2115 = vmatprep.subr.bf16.mxu0 0
        %2116 = vmatpush1.bf16.msra.mxu0 %v1652
        %2117 = vmatprep.subr.bf16.mxu0 0
        %2118 = vmatpush1.bf16.msra.mxu0 %v1651
        %2119 = vmatprep.subr.bf16.mxu0 0
        %2120 = vmatpush1.bf16.msra.mxu0 %v1650
        %2121 = vmatprep.subr.bf16.mxu0 0
        %2122 = vmatpush1.bf16.msra.mxu0 %v1649
        %2123 = vmatprep.subr.bf16.mxu0 0
        %2124 = vmatpush1.bf16.msra.mxu0 %v1648
        %2125 = vmatprep.subr.bf16.mxu0 0
        %2126 = vmatpush1.bf16.msra.mxu0 %v1647
        %2127 = vmatprep.subr.bf16.mxu0 0
        %2128 = vmatpush2.bf16.msra.mxu0 %v1662
        %2129 = vmatprep.subr.bf16.mxu0 0
        %2130 = vmatpush2.bf16.msra.mxu0 %v1661
        %2131 = vmatprep.subr.bf16.mxu0 0
        %2132 = vmatpush2.bf16.msra.mxu0 %v1660
        %2133 = vmatprep.subr.bf16.mxu0 0
        %2134 = vmatpush2.bf16.msra.mxu0 %v1659
        %2135 = vmatprep.subr.bf16.mxu0 0
        %2136 = vmatpush2.bf16.msra.mxu0 %v1658
        %2137 = vmatprep.subr.bf16.mxu0 0
        %2138 = vmatpush2.bf16.msra.mxu0 %v1657
        %2139 = vmatprep.subr.bf16.mxu0 0
        %2140 = vmatpush2.bf16.msra.mxu0 %v1656
        %2141 = vmatprep.subr.bf16.mxu0 0
        %2142 = vmatpush2.bf16.msra.mxu0 %v1655
        %2143 = vmatprep.mubr.bf16.mxu0 %v587
        %2144 = vmatmul.mubr.bf16.gmra.mxu0 %v586
        %v2145 = vpop.f32.mrf.mxu0
        %v2146 = vadd.f32 %v2042, %v2145
        %v2147 = vpop.f32.mrf.mxu0
        %v2148 = vpop.f32.mrf.mxu0
        %v2149 = vadd.f32 %v2045, %v2148
        %v2150 = vpop.f32.mrf.mxu0
        %2151 = vmatprep.mubr.bf16.mxu0 %v605
        %2152 = vmatmul.mubr.bf16.gmra.mxu0 %v604
        %v2153 = vpop.f32.mrf.mxu0
        %v2154 = vadd.f32 %v2050, %v2153
        %v2155 = vpop.f32.mrf.mxu0
        %v2156 = vpop.f32.mrf.mxu0
        %v2157 = vadd.f32 %v2053, %v2156
        %v2158 = vpop.f32.mrf.mxu0
        %2159 = vmatprep.mubr.bf16.mxu0 %v623
        %2160 = vmatmul.mubr.bf16.gmra.mxu0 %v622
        %v2161 = vpop.f32.mrf.mxu0
        %v2162 = vadd.f32 %v2058, %v2161
        %v2163 = vpop.f32.mrf.mxu0
        %v2164 = vpop.f32.mrf.mxu0
        %v2165 = vadd.f32 %v2061, %v2164
        %v2166 = vpop.f32.mrf.mxu0
        %2167 = vmatprep.mubr.bf16.mxu0 %v641
        %2168 = vmatmul.mubr.bf16.gmra.mxu0 %v640
        %v2169 = vpop.f32.mrf.mxu0
        %v2170 = vadd.f32 %v2066, %v2169
        %v2171 = vpop.f32.mrf.mxu0
        %v2172 = vpop.f32.mrf.mxu0
        %v2173 = vadd.f32 %v2069, %v2172
        %v2174 = vpop.f32.mrf.mxu0
        %2175 = vmatprep.mubr.bf16.mxu0 %v659
        %2176 = vmatmul.mubr.bf16.gmra.mxu0 %v658
        %v2177 = vpop.f32.mrf.mxu0
        %v2178 = vadd.f32 %v2074, %v2177
        %v2179 = vpop.f32.mrf.mxu0
        %v2180 = vpop.f32.mrf.mxu0
        %v2181 = vadd.f32 %v2077, %v2180
        %v2182 = vpop.f32.mrf.mxu0
        %2183 = vmatprep.mubr.bf16.mxu0 %v677
        %2184 = vmatmul.mubr.bf16.gmra.mxu0 %v676
        %v2185 = vpop.f32.mrf.mxu0
        %v2186 = vadd.f32 %v2082, %v2185
        %v2187 = vpop.f32.mrf.mxu0
        %v2188 = vpop.f32.mrf.mxu0
        %v2189 = vadd.f32 %v2085, %v2188
        %v2190 = vpop.f32.mrf.mxu0
        %2191 = vmatprep.mubr.bf16.mxu0 %v695
        %2192 = vmatmul.mubr.bf16.gmra.mxu0 %v694
        %v2193 = vpop.f32.mrf.mxu0
        %v2194 = vadd.f32 %v2090, %v2193
        %v2195 = vpop.f32.mrf.mxu0
        %v2196 = vpop.f32.mrf.mxu0
        %v2197 = vadd.f32 %v2093, %v2196
        %v2198 = vpop.f32.mrf.mxu0
        %2199 = vmatprep.mubr.bf16.mxu0 %v713
        %2200 = vmatmul.mubr.bf16.gmra.mxu0 %v712
        %v2201 = vpop.f32.mrf.mxu0
        %v2202 = vadd.f32 %v2098, %v2201
        %v2203 = vpop.f32.mrf.mxu0
        %v2204 = vpop.f32.mrf.mxu0
        %v2205 = vadd.f32 %v2101, %v2204
        %v2206 = vpop.f32.mrf.mxu0
        %2207 = vmatprep.mubr.bf16.mxu0 %v731
        %2208 = vmatmul.mubr.bf16.gmra.mxu0 %v730
        %v2209 = vpop.f32.mrf.mxu0
        %v2210 = vadd.f32 %v2106, %v2209
        %v2211 = vpop.f32.mrf.mxu0
        %v2212 = vpop.f32.mrf.mxu0
        %v2213 = vpop.f32.mrf.mxu0
        %2214 = vdwg.mxu0
        %2215 = vmatprep.subr.bf16.mxu0 0
        %2216 = vmatpush1.bf16.msra.mxu0 %v1670
        %2217 = vmatprep.subr.bf16.mxu0 0
        %2218 = vmatpush1.bf16.msra.mxu0 %v1669
        %2219 = vmatprep.subr.bf16.mxu0 0
        %2220 = vmatpush1.bf16.msra.mxu0 %v1668
        %2221 = vmatprep.subr.bf16.mxu0 0
        %2222 = vmatpush1.bf16.msra.mxu0 %v1667
        %2223 = vmatprep.subr.bf16.mxu0 0
        %2224 = vmatpush1.bf16.msra.mxu0 %v1666
        %2225 = vmatprep.subr.bf16.mxu0 0
        %2226 = vmatpush1.bf16.msra.mxu0 %v1665
        %2227 = vmatprep.subr.bf16.mxu0 0
        %2228 = vmatpush1.bf16.msra.mxu0 %v1664
        %2229 = vmatprep.subr.bf16.mxu0 0
        %2230 = vmatpush1.bf16.msra.mxu0 %v1663
        %2231 = vmatprep.subr.bf16.mxu0 0
        %2232 = vmatpush2.bf16.msra.mxu0 %v1678
        %2233 = vmatprep.subr.bf16.mxu0 0
        %2234 = vmatpush2.bf16.msra.mxu0 %v1677
        %2235 = vmatprep.subr.bf16.mxu0 0
        %2236 = vmatpush2.bf16.msra.mxu0 %v1676
        %2237 = vmatprep.subr.bf16.mxu0 0
        %2238 = vmatpush2.bf16.msra.mxu0 %v1675
        %2239 = vmatprep.subr.bf16.mxu0 0
        %2240 = vmatpush2.bf16.msra.mxu0 %v1674
        %2241 = vmatprep.subr.bf16.mxu0 0
        %2242 = vmatpush2.bf16.msra.mxu0 %v1673
        %2243 = vmatprep.subr.bf16.mxu0 0
        %2244 = vmatpush2.bf16.msra.mxu0 %v1672
        %2245 = vmatprep.subr.bf16.mxu0 0
        %2246 = vmatpush2.bf16.msra.mxu0 %v1671
        %2247 = vmatprep.mubr.bf16.mxu0 %v589
        %2248 = vmatmul.mubr.bf16.gmra.mxu0 %v588
        %v2249 = vpop.f32.mrf.mxu0
        %v2250 = vadd.f32 %v2146, %v2249
        %v2251 = vpop.f32.mrf.mxu0
        %v2252 = vpop.f32.mrf.mxu0
        %v2253 = vadd.f32 %v2149, %v2252
        %v2254 = vpop.f32.mrf.mxu0
        %2255 = vmatprep.mubr.bf16.mxu0 %v607
        %2256 = vmatmul.mubr.bf16.gmra.mxu0 %v606
        %v2257 = vpop.f32.mrf.mxu0
        %v2258 = vadd.f32 %v2154, %v2257
        %v2259 = vpop.f32.mrf.mxu0
        %v2260 = vpop.f32.mrf.mxu0
        %v2261 = vadd.f32 %v2157, %v2260
        %v2262 = vpop.f32.mrf.mxu0
        %2263 = vmatprep.mubr.bf16.mxu0 %v625
        %2264 = vmatmul.mubr.bf16.gmra.mxu0 %v624
        %v2265 = vpop.f32.mrf.mxu0
        %v2266 = vadd.f32 %v2162, %v2265
        %v2267 = vpop.f32.mrf.mxu0
        %v2268 = vpop.f32.mrf.mxu0
        %v2269 = vadd.f32 %v2165, %v2268
        %v2270 = vpop.f32.mrf.mxu0
        %2271 = vmatprep.mubr.bf16.mxu0 %v643
        %2272 = vmatmul.mubr.bf16.gmra.mxu0 %v642
        %v2273 = vpop.f32.mrf.mxu0
        %v2274 = vadd.f32 %v2170, %v2273
        %v2275 = vpop.f32.mrf.mxu0
        %v2276 = vpop.f32.mrf.mxu0
        %v2277 = vadd.f32 %v2173, %v2276
        %v2278 = vpop.f32.mrf.mxu0
        %2279 = vmatprep.mubr.bf16.mxu0 %v661
        %2280 = vmatmul.mubr.bf16.gmra.mxu0 %v660
        %v2281 = vpop.f32.mrf.mxu0
        %v2282 = vadd.f32 %v2178, %v2281
        %v2283 = vpop.f32.mrf.mxu0
        %v2284 = vpop.f32.mrf.mxu0
        %v2285 = vadd.f32 %v2181, %v2284
        %v2286 = vpop.f32.mrf.mxu0
        %2287 = vmatprep.mubr.bf16.mxu0 %v679
        %2288 = vmatmul.mubr.bf16.gmra.mxu0 %v678
        %v2289 = vpop.f32.mrf.mxu0
        %v2290 = vadd.f32 %v2186, %v2289
        %v2291 = vpop.f32.mrf.mxu0
        %v2292 = vpop.f32.mrf.mxu0
        %v2293 = vadd.f32 %v2189, %v2292
        %v2294 = vpop.f32.mrf.mxu0
        %2295 = vmatprep.mubr.bf16.mxu0 %v697
        %2296 = vmatmul.mubr.bf16.gmra.mxu0 %v696
        %v2297 = vpop.f32.mrf.mxu0
        %v2298 = vadd.f32 %v2194, %v2297
        %v2299 = vpop.f32.mrf.mxu0
        %v2300 = vpop.f32.mrf.mxu0
        %v2301 = vadd.f32 %v2197, %v2300
        %v2302 = vpop.f32.mrf.mxu0
        %2303 = vmatprep.mubr.bf16.mxu0 %v715
        %2304 = vmatmul.mubr.bf16.gmra.mxu0 %v714
        %v2305 = vpop.f32.mrf.mxu0
        %v2306 = vadd.f32 %v2202, %v2305
        %v2307 = vpop.f32.mrf.mxu0
        %v2308 = vpop.f32.mrf.mxu0
        %v2309 = vadd.f32 %v2205, %v2308
        %v2310 = vpop.f32.mrf.mxu0
        %2311 = vmatprep.mubr.bf16.mxu0 %v733
        %2312 = vmatmul.mubr.bf16.gmra.mxu0 %v732
        %v2313 = vpop.f32.mrf.mxu0
        %v2314 = vadd.f32 %v2210, %v2313
        %v2315 = vpop.f32.mrf.mxu0
        %v2316 = vpop.f32.mrf.mxu0
        %v2317 = vpop.f32.mrf.mxu0
        %2318 = vdwg.mxu0
        %2319 = vmatprep.subr.bf16.mxu0 0
        %2320 = vmatpush1.bf16.msra.mxu0 %v1686
        %2321 = vmatprep.subr.bf16.mxu0 0
        %2322 = vmatpush1.bf16.msra.mxu0 %v1685
        %2323 = vmatprep.subr.bf16.mxu0 0
        %2324 = vmatpush1.bf16.msra.mxu0 %v1684
        %2325 = vmatprep.subr.bf16.mxu0 0
        %2326 = vmatpush1.bf16.msra.mxu0 %v1683
        %2327 = vmatprep.subr.bf16.mxu0 0
        %2328 = vmatpush1.bf16.msra.mxu0 %v1682
        %2329 = vmatprep.subr.bf16.mxu0 0
        %2330 = vmatpush1.bf16.msra.mxu0 %v1681
        %2331 = vmatprep.subr.bf16.mxu0 0
        %2332 = vmatpush1.bf16.msra.mxu0 %v1680
        %2333 = vmatprep.subr.bf16.mxu0 0
        %2334 = vmatpush1.bf16.msra.mxu0 %v1679
        %2335 = vmatprep.subr.bf16.mxu0 0
        %2336 = vmatpush2.bf16.msra.mxu0 %v1694
        %2337 = vmatprep.subr.bf16.mxu0 0
        %2338 = vmatpush2.bf16.msra.mxu0 %v1693
        %2339 = vmatprep.subr.bf16.mxu0 0
        %2340 = vmatpush2.bf16.msra.mxu0 %v1692
        %2341 = vmatprep.subr.bf16.mxu0 0
        %2342 = vmatpush2.bf16.msra.mxu0 %v1691
        %2343 = vmatprep.subr.bf16.mxu0 0
        %2344 = vmatpush2.bf16.msra.mxu0 %v1690
        %2345 = vmatprep.subr.bf16.mxu0 0
        %2346 = vmatpush2.bf16.msra.mxu0 %v1689
        %2347 = vmatprep.subr.bf16.mxu0 0
        %2348 = vmatpush2.bf16.msra.mxu0 %v1688
        %2349 = vmatprep.subr.bf16.mxu0 0
        %2350 = vmatpush2.bf16.msra.mxu0 %v1687
        %2351 = vmatprep.mubr.bf16.mxu0 %v591
        %2352 = vmatmul.mubr.bf16.gmra.mxu0 %v590
        %v2353 = vpop.f32.mrf.mxu0
        %v2354 = vadd.f32 %v2250, %v2353
        %v2355 = vpop.f32.mrf.mxu0
        %v2356 = vpop.f32.mrf.mxu0
        %v2357 = vadd.f32 %v2253, %v2356
        %v2358 = vpop.f32.mrf.mxu0
        %2359 = vmatprep.mubr.bf16.mxu0 %v609
        %2360 = vmatmul.mubr.bf16.gmra.mxu0 %v608
        %v2361 = vpop.f32.mrf.mxu0
        %v2362 = vadd.f32 %v2258, %v2361
        %v2363 = vpop.f32.mrf.mxu0
        %v2364 = vpop.f32.mrf.mxu0
        %v2365 = vadd.f32 %v2261, %v2364
        %v2366 = vpop.f32.mrf.mxu0
        %2367 = vmatprep.mubr.bf16.mxu0 %v627
        %2368 = vmatmul.mubr.bf16.gmra.mxu0 %v626
        %v2369 = vpop.f32.mrf.mxu0
        %v2370 = vadd.f32 %v2266, %v2369
        %v2371 = vpop.f32.mrf.mxu0
        %v2372 = vpop.f32.mrf.mxu0
        %v2373 = vadd.f32 %v2269, %v2372
        %v2374 = vpop.f32.mrf.mxu0
        %2375 = vmatprep.mubr.bf16.mxu0 %v645
        %2376 = vmatmul.mubr.bf16.gmra.mxu0 %v644
        %v2377 = vpop.f32.mrf.mxu0
        %v2378 = vadd.f32 %v2274, %v2377
        %v2379 = vpop.f32.mrf.mxu0
        %v2380 = vpop.f32.mrf.mxu0
        %v2381 = vadd.f32 %v2277, %v2380
        %v2382 = vpop.f32.mrf.mxu0
        %2383 = vmatprep.mubr.bf16.mxu0 %v663
        %2384 = vmatmul.mubr.bf16.gmra.mxu0 %v662
        %v2385 = vpop.f32.mrf.mxu0
        %v2386 = vadd.f32 %v2282, %v2385
        %v2387 = vpop.f32.mrf.mxu0
        %v2388 = vpop.f32.mrf.mxu0
        %v2389 = vadd.f32 %v2285, %v2388
        %v2390 = vpop.f32.mrf.mxu0
        %2391 = vmatprep.mubr.bf16.mxu0 %v681
        %2392 = vmatmul.mubr.bf16.gmra.mxu0 %v680
        %v2393 = vpop.f32.mrf.mxu0
        %v2394 = vadd.f32 %v2290, %v2393
        %v2395 = vpop.f32.mrf.mxu0
        %v2396 = vpop.f32.mrf.mxu0
        %v2397 = vadd.f32 %v2293, %v2396
        %v2398 = vpop.f32.mrf.mxu0
        %2399 = vmatprep.mubr.bf16.mxu0 %v699
        %2400 = vmatmul.mubr.bf16.gmra.mxu0 %v698
        %v2401 = vpop.f32.mrf.mxu0
        %v2402 = vadd.f32 %v2298, %v2401
        %v2403 = vpop.f32.mrf.mxu0
        %v2404 = vpop.f32.mrf.mxu0
        %v2405 = vadd.f32 %v2301, %v2404
        %v2406 = vpop.f32.mrf.mxu0
        %2407 = vmatprep.mubr.bf16.mxu0 %v717
        %2408 = vmatmul.mubr.bf16.gmra.mxu0 %v716
        %v2409 = vpop.f32.mrf.mxu0
        %v2410 = vadd.f32 %v2306, %v2409
        %v2411 = vpop.f32.mrf.mxu0
        %v2412 = vpop.f32.mrf.mxu0
        %v2413 = vadd.f32 %v2309, %v2412
        %v2414 = vpop.f32.mrf.mxu0
        %2415 = vmatprep.mubr.bf16.mxu0 %v735
        %2416 = vmatmul.mubr.bf16.gmra.mxu0 %v734
        %v2417 = vpop.f32.mrf.mxu0
        %v2418 = vadd.f32 %v2314, %v2417
        %v2419 = vpop.f32.mrf.mxu0
        %v2420 = vpop.f32.mrf.mxu0
        %v2421 = vpop.f32.mrf.mxu0
        %2422 = vdwg.mxu0
        %2423 = vmatprep.subr.bf16.mxu0 0
        %2424 = vmatpush1.bf16.msra.mxu0 %v1702
        %2425 = vmatprep.subr.bf16.mxu0 0
        %2426 = vmatpush1.bf16.msra.mxu0 %v1701
        %2427 = vmatprep.subr.bf16.mxu0 0
        %2428 = vmatpush1.bf16.msra.mxu0 %v1700
        %2429 = vmatprep.subr.bf16.mxu0 0
        %2430 = vmatpush1.bf16.msra.mxu0 %v1699
        %2431 = vmatprep.subr.bf16.mxu0 0
        %2432 = vmatpush1.bf16.msra.mxu0 %v1698
        %2433 = vmatprep.subr.bf16.mxu0 0
        %2434 = vmatpush1.bf16.msra.mxu0 %v1697
        %2435 = vmatprep.subr.bf16.mxu0 0
        %2436 = vmatpush1.bf16.msra.mxu0 %v1696
        %2437 = vmatprep.subr.bf16.mxu0 0
        %2438 = vmatpush1.bf16.msra.mxu0 %v1695
        %2439 = vmatprep.subr.bf16.mxu0 0
        %2440 = vmatpush2.bf16.msra.mxu0 %v1710
        %2441 = vmatprep.subr.bf16.mxu0 0
        %2442 = vmatpush2.bf16.msra.mxu0 %v1709
        %2443 = vmatprep.subr.bf16.mxu0 0
        %2444 = vmatpush2.bf16.msra.mxu0 %v1708
        %2445 = vmatprep.subr.bf16.mxu0 0
        %2446 = vmatpush2.bf16.msra.mxu0 %v1707
        %2447 = vmatprep.subr.bf16.mxu0 0
        %2448 = vmatpush2.bf16.msra.mxu0 %v1706
        %2449 = vmatprep.subr.bf16.mxu0 0
        %2450 = vmatpush2.bf16.msra.mxu0 %v1705
        %2451 = vmatprep.subr.bf16.mxu0 0
        %2452 = vmatpush2.bf16.msra.mxu0 %v1704
        %2453 = vmatprep.subr.bf16.mxu0 0
        %2454 = vmatpush2.bf16.msra.mxu0 %v1703
        %2455 = vmatprep.mubr.bf16.mxu0 %v593
        %2456 = vmatmul.mubr.bf16.gmra.mxu0 %v592
        %v2457 = vpop.f32.mrf.mxu0
        %v2458 = vadd.f32 %v2354, %v2457
        %v2459 = vpop.f32.mrf.mxu0
        %v2460 = vpop.f32.mrf.mxu0
        %v2461 = vadd.f32 %v2357, %v2460
        %v2462 = vpop.f32.mrf.mxu0
        %2463 = vmatprep.mubr.bf16.mxu0 %v611
        %2464 = vmatmul.mubr.bf16.gmra.mxu0 %v610
        %v2465 = vpop.f32.mrf.mxu0
        %v2466 = vadd.f32 %v2362, %v2465
        %v2467 = vpop.f32.mrf.mxu0
        %v2468 = vpop.f32.mrf.mxu0
        %v2469 = vadd.f32 %v2365, %v2468
        %v2470 = vpop.f32.mrf.mxu0
        %2471 = vmatprep.mubr.bf16.mxu0 %v629
        %2472 = vmatmul.mubr.bf16.gmra.mxu0 %v628
        %v2473 = vpop.f32.mrf.mxu0
        %v2474 = vadd.f32 %v2370, %v2473
        %v2475 = vpop.f32.mrf.mxu0
        %v2476 = vpop.f32.mrf.mxu0
        %v2477 = vadd.f32 %v2373, %v2476
        %v2478 = vpop.f32.mrf.mxu0
        %2479 = vmatprep.mubr.bf16.mxu0 %v647
        %2480 = vmatmul.mubr.bf16.gmra.mxu0 %v646
        %v2481 = vpop.f32.mrf.mxu0
        %v2482 = vadd.f32 %v2378, %v2481
        %v2483 = vpop.f32.mrf.mxu0
        %v2484 = vpop.f32.mrf.mxu0
        %v2485 = vadd.f32 %v2381, %v2484
        %v2486 = vpop.f32.mrf.mxu0
        %2487 = vmatprep.mubr.bf16.mxu0 %v665
        %2488 = vmatmul.mubr.bf16.gmra.mxu0 %v664
        %v2489 = vpop.f32.mrf.mxu0
        %v2490 = vadd.f32 %v2386, %v2489
        %v2491 = vpop.f32.mrf.mxu0
        %v2492 = vpop.f32.mrf.mxu0
        %v2493 = vadd.f32 %v2389, %v2492
        %v2494 = vpop.f32.mrf.mxu0
        %2495 = vmatprep.mubr.bf16.mxu0 %v683
        %2496 = vmatmul.mubr.bf16.gmra.mxu0 %v682
        %v2497 = vpop.f32.mrf.mxu0
        %v2498 = vadd.f32 %v2394, %v2497
        %v2499 = vpop.f32.mrf.mxu0
        %v2500 = vpop.f32.mrf.mxu0
        %v2501 = vadd.f32 %v2397, %v2500
        %v2502 = vpop.f32.mrf.mxu0
        %2503 = vmatprep.mubr.bf16.mxu0 %v701
        %2504 = vmatmul.mubr.bf16.gmra.mxu0 %v700
        %v2505 = vpop.f32.mrf.mxu0
        %v2506 = vadd.f32 %v2402, %v2505
        %v2507 = vpop.f32.mrf.mxu0
        %v2508 = vpop.f32.mrf.mxu0
        %v2509 = vadd.f32 %v2405, %v2508
        %v2510 = vpop.f32.mrf.mxu0
        %2511 = vmatprep.mubr.bf16.mxu0 %v719
        %2512 = vmatmul.mubr.bf16.gmra.mxu0 %v718
        %v2513 = vpop.f32.mrf.mxu0
        %v2514 = vadd.f32 %v2410, %v2513
        %v2515 = vpop.f32.mrf.mxu0
        %v2516 = vpop.f32.mrf.mxu0
        %v2517 = vadd.f32 %v2413, %v2516
        %v2518 = vpop.f32.mrf.mxu0
        %2519 = vmatprep.mubr.bf16.mxu0 %v737
        %2520 = vmatmul.mubr.bf16.gmra.mxu0 %v736
        %v2521 = vpop.f32.mrf.mxu0
        %v2522 = vadd.f32 %v2418, %v2521
        %v2523 = vpop.f32.mrf.mxu0
        %v2524 = vpop.f32.mrf.mxu0
        %v2525 = vpop.f32.mrf.mxu0
        %2526 = vdwg.mxu0
        %2527 = vmatprep.subr.bf16.mxu0 0
        %2528 = vmatpush1.bf16.msra.mxu0 %v1718
        %2529 = vmatprep.subr.bf16.mxu0 0
        %2530 = vmatpush1.bf16.msra.mxu0 %v1717
        %2531 = vmatprep.subr.bf16.mxu0 0
        %2532 = vmatpush1.bf16.msra.mxu0 %v1716
        %2533 = vmatprep.subr.bf16.mxu0 0
        %2534 = vmatpush1.bf16.msra.mxu0 %v1715
        %2535 = vmatprep.subr.bf16.mxu0 0
        %2536 = vmatpush1.bf16.msra.mxu0 %v1714
        %2537 = vmatprep.subr.bf16.mxu0 0
        %2538 = vmatpush1.bf16.msra.mxu0 %v1713
        %2539 = vmatprep.subr.bf16.mxu0 0
        %2540 = vmatpush1.bf16.msra.mxu0 %v1712
        %2541 = vmatprep.subr.bf16.mxu0 0
        %2542 = vmatpush1.bf16.msra.mxu0 %v1711
        %2543 = vmatprep.subr.bf16.mxu0 0
        %2544 = vmatpush2.bf16.msra.mxu0 %v1726
        %2545 = vmatprep.subr.bf16.mxu0 0
        %2546 = vmatpush2.bf16.msra.mxu0 %v1725
        %2547 = vmatprep.subr.bf16.mxu0 0
        %2548 = vmatpush2.bf16.msra.mxu0 %v1724
        %2549 = vmatprep.subr.bf16.mxu0 0
        %2550 = vmatpush2.bf16.msra.mxu0 %v1723
        %2551 = vmatprep.subr.bf16.mxu0 0
        %2552 = vmatpush2.bf16.msra.mxu0 %v1722
        %2553 = vmatprep.subr.bf16.mxu0 0
        %2554 = vmatpush2.bf16.msra.mxu0 %v1721
        %2555 = vmatprep.subr.bf16.mxu0 0
        %2556 = vmatpush2.bf16.msra.mxu0 %v1720
        %2557 = vmatprep.subr.bf16.mxu0 0
        %2558 = vmatpush2.bf16.msra.mxu0 %v1719
        %2559 = vmatprep.mubr.bf16.mxu0 %v595
        %2560 = vmatmul.mubr.bf16.gmra.mxu0 %v594
        %v2561 = vpop.f32.mrf.mxu0
        %v2562 = vadd.f32 %v2458, %v2561
        %v2563 = vpop.f32.mrf.mxu0
        %v2564 = vpop.f32.mrf.mxu0
        %v2565 = vadd.f32 %v2461, %v2564
        %v2566 = vpop.f32.mrf.mxu0
        %2567 = vmatprep.mubr.bf16.mxu0 %v613
        %2568 = vmatmul.mubr.bf16.gmra.mxu0 %v612
        %v2569 = vpop.f32.mrf.mxu0
        %v2570 = vadd.f32 %v2466, %v2569
        %v2571 = vpop.f32.mrf.mxu0
        %v2572 = vpop.f32.mrf.mxu0
        %v2573 = vadd.f32 %v2469, %v2572
        %v2574 = vpop.f32.mrf.mxu0
        %2575 = vmatprep.mubr.bf16.mxu0 %v631
        %2576 = vmatmul.mubr.bf16.gmra.mxu0 %v630
        %v2577 = vpop.f32.mrf.mxu0
        %v2578 = vadd.f32 %v2474, %v2577
        %v2579 = vpop.f32.mrf.mxu0
        %v2580 = vpop.f32.mrf.mxu0
        %v2581 = vadd.f32 %v2477, %v2580
        %v2582 = vpop.f32.mrf.mxu0
        %2583 = vmatprep.mubr.bf16.mxu0 %v649
        %2584 = vmatmul.mubr.bf16.gmra.mxu0 %v648
        %v2585 = vpop.f32.mrf.mxu0
        %v2586 = vadd.f32 %v2482, %v2585
        %v2587 = vpop.f32.mrf.mxu0
        %v2588 = vpop.f32.mrf.mxu0
        %v2589 = vadd.f32 %v2485, %v2588
        %v2590 = vpop.f32.mrf.mxu0
        %2591 = vmatprep.mubr.bf16.mxu0 %v667
        %2592 = vmatmul.mubr.bf16.gmra.mxu0 %v666
        %v2593 = vpop.f32.mrf.mxu0
        %v2594 = vadd.f32 %v2490, %v2593
        %v2595 = vpop.f32.mrf.mxu0
        %v2596 = vpop.f32.mrf.mxu0
        %v2597 = vadd.f32 %v2493, %v2596
        %v2598 = vpop.f32.mrf.mxu0
        %2599 = vmatprep.mubr.bf16.mxu0 %v685
        %2600 = vmatmul.mubr.bf16.gmra.mxu0 %v684
        %v2601 = vpop.f32.mrf.mxu0
        %v2602 = vadd.f32 %v2498, %v2601
        %v2603 = vpop.f32.mrf.mxu0
        %v2604 = vpop.f32.mrf.mxu0
        %v2605 = vadd.f32 %v2501, %v2604
        %v2606 = vpop.f32.mrf.mxu0
        %2607 = vmatprep.mubr.bf16.mxu0 %v703
        %2608 = vmatmul.mubr.bf16.gmra.mxu0 %v702
        %v2609 = vpop.f32.mrf.mxu0
        %v2610 = vadd.f32 %v2506, %v2609
        %v2611 = vpop.f32.mrf.mxu0
        %v2612 = vpop.f32.mrf.mxu0
        %v2613 = vadd.f32 %v2509, %v2612
        %v2614 = vpop.f32.mrf.mxu0
        %2615 = vmatprep.mubr.bf16.mxu0 %v721
        %2616 = vmatmul.mubr.bf16.gmra.mxu0 %v720
        %v2617 = vpop.f32.mrf.mxu0
        %v2618 = vadd.f32 %v2514, %v2617
        %v2619 = vpop.f32.mrf.mxu0
        %v2620 = vpop.f32.mrf.mxu0
        %v2621 = vadd.f32 %v2517, %v2620
        %v2622 = vpop.f32.mrf.mxu0
        %2623 = vmatprep.mubr.bf16.mxu0 %v739
        %2624 = vmatmul.mubr.bf16.gmra.mxu0 %v738
        %v2625 = vpop.f32.mrf.mxu0
        %v2626 = vadd.f32 %v2522, %v2625
        %v2627 = vpop.f32.mrf.mxu0
        %v2628 = vpop.f32.mrf.mxu0
        %v2629 = vpop.f32.mrf.mxu0
        %2630 = vdwg.mxu0
        %2631 = vmatprep.subr.bf16.mxu0 0
        %2632 = vmatpush1.bf16.msra.mxu0 %v1734
        %2633 = vmatprep.subr.bf16.mxu0 0
        %2634 = vmatpush1.bf16.msra.mxu0 %v1733
        %2635 = vmatprep.subr.bf16.mxu0 0
        %2636 = vmatpush1.bf16.msra.mxu0 %v1732
        %2637 = vmatprep.subr.bf16.mxu0 0
        %2638 = vmatpush1.bf16.msra.mxu0 %v1731
        %2639 = vmatprep.subr.bf16.mxu0 0
        %2640 = vmatpush1.bf16.msra.mxu0 %v1730
        %2641 = vmatprep.subr.bf16.mxu0 0
        %2642 = vmatpush1.bf16.msra.mxu0 %v1729
        %2643 = vmatprep.subr.bf16.mxu0 0
        %2644 = vmatpush1.bf16.msra.mxu0 %v1728
        %2645 = vmatprep.subr.bf16.mxu0 0
        %2646 = vmatpush1.bf16.msra.mxu0 %v1727
        %2647 = vmatprep.subr.bf16.mxu0 0
        %2648 = vmatpush2.bf16.msra.mxu0 %v1742
        %2649 = vmatprep.subr.bf16.mxu0 0
        %2650 = vmatpush2.bf16.msra.mxu0 %v1741
        %2651 = vmatprep.subr.bf16.mxu0 0
        %2652 = vmatpush2.bf16.msra.mxu0 %v1740
        %2653 = vmatprep.subr.bf16.mxu0 0
        %2654 = vmatpush2.bf16.msra.mxu0 %v1739
        %2655 = vmatprep.subr.bf16.mxu0 0
        %2656 = vmatpush2.bf16.msra.mxu0 %v1738
        %2657 = vmatprep.subr.bf16.mxu0 0
        %2658 = vmatpush2.bf16.msra.mxu0 %v1737
        %2659 = vmatprep.subr.bf16.mxu0 0
        %2660 = vmatpush2.bf16.msra.mxu0 %v1736
        %2661 = vmatprep.subr.bf16.mxu0 0
        %2662 = vmatpush2.bf16.msra.mxu0 %v1735
        %2663 = vmatprep.mubr.bf16.mxu0 %v597
        %2664 = vmatmul.mubr.bf16.gmra.mxu0 %v596
        %v2665 = vpop.f32.mrf.mxu0
        %v2666 = vadd.f32 %v2562, %v2665
        %v2667 = vpop.f32.mrf.mxu0
        %v2668 = vpop.f32.mrf.mxu0
        %v2669 = vadd.f32 %v2565, %v2668
        %v2670 = vpop.f32.mrf.mxu0
        %2671 = vmatprep.mubr.bf16.mxu0 %v615
        %2672 = vmatmul.mubr.bf16.gmra.mxu0 %v614
        %v2673 = vpop.f32.mrf.mxu0
        %v2674 = vadd.f32 %v2570, %v2673
        %v2675 = vpop.f32.mrf.mxu0
        %v2676 = vpop.f32.mrf.mxu0
        %v2677 = vadd.f32 %v2573, %v2676
        %v2678 = vpop.f32.mrf.mxu0
        %2679 = vmatprep.mubr.bf16.mxu0 %v633
        %2680 = vmatmul.mubr.bf16.gmra.mxu0 %v632
        %v2681 = vpop.f32.mrf.mxu0
        %v2682 = vadd.f32 %v2578, %v2681
        %v2683 = vpop.f32.mrf.mxu0
        %v2684 = vpop.f32.mrf.mxu0
        %v2685 = vadd.f32 %v2581, %v2684
        %v2686 = vpop.f32.mrf.mxu0
        %2687 = vmatprep.mubr.bf16.mxu0 %v651
        %2688 = vmatmul.mubr.bf16.gmra.mxu0 %v650
        %v2689 = vpop.f32.mrf.mxu0
        %v2690 = vadd.f32 %v2586, %v2689
        %v2691 = vpop.f32.mrf.mxu0
        %v2692 = vpop.f32.mrf.mxu0
        %v2693 = vadd.f32 %v2589, %v2692
        %v2694 = vpop.f32.mrf.mxu0
        %2695 = vmatprep.mubr.bf16.mxu0 %v669
        %2696 = vmatmul.mubr.bf16.gmra.mxu0 %v668
        %v2697 = vpop.f32.mrf.mxu0
        %v2698 = vadd.f32 %v2594, %v2697
        %v2699 = vpop.f32.mrf.mxu0
        %v2700 = vpop.f32.mrf.mxu0
        %v2701 = vadd.f32 %v2597, %v2700
        %v2702 = vpop.f32.mrf.mxu0
        %2703 = vmatprep.mubr.bf16.mxu0 %v687
        %2704 = vmatmul.mubr.bf16.gmra.mxu0 %v686
        %v2705 = vpop.f32.mrf.mxu0
        %v2706 = vadd.f32 %v2602, %v2705
        %v2707 = vpop.f32.mrf.mxu0
        %v2708 = vpop.f32.mrf.mxu0
        %v2709 = vadd.f32 %v2605, %v2708
        %v2710 = vpop.f32.mrf.mxu0
        %2711 = vmatprep.mubr.bf16.mxu0 %v705
        %2712 = vmatmul.mubr.bf16.gmra.mxu0 %v704
        %v2713 = vpop.f32.mrf.mxu0
        %v2714 = vadd.f32 %v2610, %v2713
        %v2715 = vpop.f32.mrf.mxu0
        %v2716 = vpop.f32.mrf.mxu0
        %v2717 = vadd.f32 %v2613, %v2716
        %v2718 = vpop.f32.mrf.mxu0
        %2719 = vmatprep.mubr.bf16.mxu0 %v723
        %2720 = vmatmul.mubr.bf16.gmra.mxu0 %v722
        %v2721 = vpop.f32.mrf.mxu0
        %v2722 = vadd.f32 %v2618, %v2721
        %v2723 = vpop.f32.mrf.mxu0
        %v2724 = vpop.f32.mrf.mxu0
        %v2725 = vadd.f32 %v2621, %v2724
        %v2726 = vpop.f32.mrf.mxu0
        %2727 = vmatprep.mubr.bf16.mxu0 %v741
        %2728 = vmatmul.mubr.bf16.gmra.mxu0 %v740
        %v2729 = vpop.f32.mrf.mxu0
        %v2730 = vadd.f32 %v2626, %v2729
        %v2731 = vpop.f32.mrf.mxu0
        %v2732 = vpop.f32.mrf.mxu0
        %v2733 = vpop.f32.mrf.mxu0
        %2734 = vdwg.mxu0
        %2735 = vmatprep.subr.bf16.mxu0 0
        %2736 = vmatpush1.bf16.msra.mxu0 %v1750
        %2737 = vmatprep.subr.bf16.mxu0 0
        %2738 = vmatpush1.bf16.msra.mxu0 %v1749
        %2739 = vmatprep.subr.bf16.mxu0 0
        %2740 = vmatpush1.bf16.msra.mxu0 %v1748
        %2741 = vmatprep.subr.bf16.mxu0 0
        %2742 = vmatpush1.bf16.msra.mxu0 %v1747
        %2743 = vmatprep.subr.bf16.mxu0 0
        %2744 = vmatpush1.bf16.msra.mxu0 %v1746
        %2745 = vmatprep.subr.bf16.mxu0 0
        %2746 = vmatpush1.bf16.msra.mxu0 %v1745
        %2747 = vmatprep.subr.bf16.mxu0 0
        %2748 = vmatpush1.bf16.msra.mxu0 %v1744
        %2749 = vmatprep.subr.bf16.mxu0 0
        %2750 = vmatpush1.bf16.msra.mxu0 %v1743
        %2751 = vmatprep.subr.bf16.mxu0 0
        %2752 = vmatpush2.bf16.msra.mxu0 %v1758
        %2753 = vmatprep.subr.bf16.mxu0 0
        %2754 = vmatpush2.bf16.msra.mxu0 %v1757
        %2755 = vmatprep.subr.bf16.mxu0 0
        %2756 = vmatpush2.bf16.msra.mxu0 %v1756
        %2757 = vmatprep.subr.bf16.mxu0 0
        %2758 = vmatpush2.bf16.msra.mxu0 %v1755
        %2759 = vmatprep.subr.bf16.mxu0 0
        %2760 = vmatpush2.bf16.msra.mxu0 %v1754
        %2761 = vmatprep.subr.bf16.mxu0 0
        %2762 = vmatpush2.bf16.msra.mxu0 %v1753
        %2763 = vmatprep.subr.bf16.mxu0 0
        %2764 = vmatpush2.bf16.msra.mxu0 %v1752
        %2765 = vmatprep.subr.bf16.mxu0 0
        %2766 = vmatpush2.bf16.msra.mxu0 %v1751
        %2767 = vmatprep.mubr.bf16.mxu0 %v599
        %2768 = vmatmul.mubr.bf16.gmra.mxu0 %v598
        %v2769 = vpop.f32.mrf.mxu0
        %v2770 = vadd.f32 %v2666, %v2769
        %v2771 = vpop.f32.mrf.mxu0
        %v2772 = vpop.f32.mrf.mxu0
        %v2773 = vadd.f32 %v2669, %v2772
        %v2774 = vpop.f32.mrf.mxu0
        %2775 = vmatprep.mubr.bf16.mxu0 %v617
        %2776 = vmatmul.mubr.bf16.gmra.mxu0 %v616
        %v2777 = vpop.f32.mrf.mxu0
        %v2778 = vadd.f32 %v2674, %v2777
        %v2779 = vpop.f32.mrf.mxu0
        %v2780 = vpop.f32.mrf.mxu0
        %v2781 = vadd.f32 %v2677, %v2780
        %v2782 = vpop.f32.mrf.mxu0
        %2783 = vmatprep.mubr.bf16.mxu0 %v635
        %2784 = vmatmul.mubr.bf16.gmra.mxu0 %v634
        %v2785 = vpop.f32.mrf.mxu0
        %v2786 = vadd.f32 %v2682, %v2785
        %v2787 = vpop.f32.mrf.mxu0
        %v2788 = vpop.f32.mrf.mxu0
        %v2789 = vadd.f32 %v2685, %v2788
        %v2790 = vpop.f32.mrf.mxu0
        %2791 = vmatprep.mubr.bf16.mxu0 %v653
        %2792 = vmatmul.mubr.bf16.gmra.mxu0 %v652
        %v2793 = vpop.f32.mrf.mxu0
        %v2794 = vadd.f32 %v2690, %v2793
        %v2795 = vpop.f32.mrf.mxu0
        %v2796 = vpop.f32.mrf.mxu0
        %v2797 = vadd.f32 %v2693, %v2796
        %v2798 = vpop.f32.mrf.mxu0
        %2799 = vmatprep.mubr.bf16.mxu0 %v671
        %2800 = vmatmul.mubr.bf16.gmra.mxu0 %v670
        %v2801 = vpop.f32.mrf.mxu0
        %v2802 = vadd.f32 %v2698, %v2801
        %v2803 = vpop.f32.mrf.mxu0
        %v2804 = vpop.f32.mrf.mxu0
        %v2805 = vadd.f32 %v2701, %v2804
        %v2806 = vpop.f32.mrf.mxu0
        %2807 = vmatprep.mubr.bf16.mxu0 %v689
        %2808 = vmatmul.mubr.bf16.gmra.mxu0 %v688
        %v2809 = vpop.f32.mrf.mxu0
        %v2810 = vadd.f32 %v2706, %v2809
        %v2811 = vpop.f32.mrf.mxu0
        %v2812 = vpop.f32.mrf.mxu0
        %v2813 = vadd.f32 %v2709, %v2812
        %v2814 = vpop.f32.mrf.mxu0
        %2815 = vmatprep.mubr.bf16.mxu0 %v707
        %2816 = vmatmul.mubr.bf16.gmra.mxu0 %v706
        %v2817 = vpop.f32.mrf.mxu0
        %v2818 = vadd.f32 %v2714, %v2817
        %v2819 = vpop.f32.mrf.mxu0
        %v2820 = vpop.f32.mrf.mxu0
        %v2821 = vadd.f32 %v2717, %v2820
        %v2822 = vpop.f32.mrf.mxu0
        %2823 = vmatprep.mubr.bf16.mxu0 %v725
        %2824 = vmatmul.mubr.bf16.gmra.mxu0 %v724
        %v2825 = vpop.f32.mrf.mxu0
        %v2826 = vadd.f32 %v2722, %v2825
        %v2827 = vpop.f32.mrf.mxu0
        %v2828 = vpop.f32.mrf.mxu0
        %v2829 = vadd.f32 %v2725, %v2828
        %v2830 = vpop.f32.mrf.mxu0
        %2831 = vmatprep.mubr.bf16.mxu0 %v743
        %2832 = vmatmul.mubr.bf16.gmra.mxu0 %v742
        %v2833 = vpop.f32.mrf.mxu0
        %v2834 = vadd.f32 %v2730, %v2833
        %v2835 = vpop.f32.mrf.mxu0
        %v2836 = vpop.f32.mrf.mxu0
        %v2837 = vpop.f32.mrf.mxu0
        %2838 = vdwg.mxu0
        %v2839 = vmax.f32 %v2770, 0.0
        %v2840 = vmax.f32 %v2773, 0.0
        %v2841 = vmax.f32 %v2778, 0.0
        %v2842 = vmax.f32 %v2781, 0.0
        %v2843 = vmax.f32 %v2786, 0.0
        %v2844 = vmax.f32 %v2789, 0.0
        %v2845 = vmax.f32 %v2794, 0.0
        %v2846 = vmax.f32 %v2797, 0.0
        %v2847 = vmax.f32 %v2802, 0.0
        %v2848 = vmax.f32 %v2805, 0.0
        %v2849 = vmax.f32 %v2810, 0.0
        %v2850 = vmax.f32 %v2813, 0.0
        %v2851 = vmax.f32 %v2818, 0.0
        %v2852 = vmax.f32 %v2821, 0.0
        %v2853 = vmax.f32 %v2826, 0.0
        %v2854 = vmax.f32 %v2829, 0.0
        %v2855 = vmax.f32 %v2834, 0.0
        %v2856 = vld [vmem:[#allocation7] sm:$0x1]
        %v2858 = vlaneseq
        %v2859 = vshrl.u32 %v2858, 7
        %v2860 = vsub.s32 0, %v2859
        %v2861 = vrot.slane %v2856, %v2860
        %v2863 = vmul.f32 %v2839, %v2861
        %v2864 = vmul.f32 %v2840, %v2861
        %v2865 = vmul.f32 %v2841, %v2861
        %v2866 = vmul.f32 %v2842, %v2861
        %v2867 = vmul.f32 %v2843, %v2861
        %v2868 = vmul.f32 %v2844, %v2861
        %v2869 = vmul.f32 %v2845, %v2861
        %v2870 = vmul.f32 %v2846, %v2861
        %v2871 = vmul.f32 %v2847, %v2861
        %v2872 = vmul.f32 %v2848, %v2861
        %v2873 = vmul.f32 %v2849, %v2861
        %v2874 = vmul.f32 %v2850, %v2861
        %v2875 = vmul.f32 %v2851, %v2861
        %v2876 = vmul.f32 %v2852, %v2861
        %v2877 = vmul.f32 %v2853, %v2861
        %v2878 = vmul.f32 %v2854, %v2861
        %v2879 = vmul.f32 %v2855, %v2861
        %vm2880 = vcmask 523264
        %v2881 = vsel %vm2880, %v2863, 0.0
        %2882 = vadd.xlane.f32.xlu0 %v2881
        %v2883 = vpop.xlane.xlu0 %2882
        %v2884 = vsel %vm2880, %v2864, 0.0
        %2885 = vadd.xlane.f32.xlu0 %v2884
        %v2886 = vpop.xlane.xlu0 %2885
        %v2887 = vsel %vm2880, %v2865, 0.0
        %2888 = vadd.xlane.f32.xlu0 %v2887
        %v2889 = vpop.xlane.xlu0 %2888
        %v2890 = vsel %vm2880, %v2866, 0.0
        %2891 = vadd.xlane.f32.xlu0 %v2890
        %v2892 = vpop.xlane.xlu0 %2891
        %v2893 = vsel %vm2880, %v2867, 0.0
        %2894 = vadd.xlane.f32.xlu0 %v2893
        %v2895 = vpop.xlane.xlu0 %2894
        %v2896 = vsel %vm2880, %v2868, 0.0
        %2897 = vadd.xlane.f32.xlu0 %v2896
        %v2898 = vpop.xlane.xlu0 %2897
        %v2899 = vsel %vm2880, %v2869, 0.0
        %2900 = vadd.xlane.f32.xlu0 %v2899
        %v2901 = vpop.xlane.xlu0 %2900
        %v2902 = vsel %vm2880, %v2870, 0.0
        %2903 = vadd.xlane.f32.xlu0 %v2902
        %v2904 = vpop.xlane.xlu0 %2903
        %v2905 = vsel %vm2880, %v2871, 0.0
        %2906 = vadd.xlane.f32.xlu0 %v2905
        %v2907 = vpop.xlane.xlu0 %2906
        %v2908 = vsel %vm2880, %v2872, 0.0
        %2909 = vadd.xlane.f32.xlu0 %v2908
        %v2910 = vpop.xlane.xlu0 %2909
        %v2911 = vsel %vm2880, %v2873, 0.0
        %2912 = vadd.xlane.f32.xlu0 %v2911
        %v2913 = vpop.xlane.xlu0 %2912
        %v2914 = vsel %vm2880, %v2874, 0.0
        %2915 = vadd.xlane.f32.xlu0 %v2914
        %v2916 = vpop.xlane.xlu0 %2915
        %v2917 = vsel %vm2880, %v2875, 0.0
        %2918 = vadd.xlane.f32.xlu0 %v2917
        %v2919 = vpop.xlane.xlu0 %2918
        %v2920 = vsel %vm2880, %v2876, 0.0
        %2921 = vadd.xlane.f32.xlu0 %v2920
        %v2922 = vpop.xlane.xlu0 %2921
        %v2923 = vsel %vm2880, %v2877, 0.0
        %2924 = vadd.xlane.f32.xlu0 %v2923
        %v2925 = vpop.xlane.xlu0 %2924
        %v2926 = vsel %vm2880, %v2878, 0.0
        %2927 = vadd.xlane.f32.xlu0 %v2926
        %v2928 = vpop.xlane.xlu0 %2927
        %v2929 = vsel %vm2880, %v2879, 0.0
        %2930 = vadd.xlane.f32.xlu0 %v2929
        %v2931 = vpop.xlane.xlu0 %2930
        %v2932 = vld [vmem:[#allocation2] sm:$0x1]
        %v2934 = vlaneseq
        %v2935 = vshrl.u32 %v2934, 7
        %v2936 = vsub.s32 0, %v2935
        %v2937 = vrot.slane %v2932, %v2936
        %v2939 = vadd.f32 %v2883, %v2937
        %v2940 = vadd.f32 %v2886, %v2937
        %v2941 = vadd.f32 %v2889, %v2937
        %v2942 = vadd.f32 %v2892, %v2937
        %v2943 = vadd.f32 %v2895, %v2937
        %v2944 = vadd.f32 %v2898, %v2937
        %v2945 = vadd.f32 %v2901, %v2937
        %v2946 = vadd.f32 %v2904, %v2937
        %v2947 = vadd.f32 %v2907, %v2937
        %v2948 = vadd.f32 %v2910, %v2937
        %v2949 = vadd.f32 %v2913, %v2937
        %v2950 = vadd.f32 %v2916, %v2937
        %v2951 = vadd.f32 %v2919, %v2937
        %v2952 = vadd.f32 %v2922, %v2937
        %v2953 = vadd.f32 %v2925, %v2937
        %v2954 = vadd.f32 %v2928, %v2937
        %v2955 = vadd.f32 %v2931, %v2937
        %vm2956 = vcmask 7168
        %2957 = vst.msk [vmem:[%s273] sm:$0xff] %vm2956, %v2939
        %2958 = vst.msk [vmem:[%s273 + $0x8] sm:$0xff] %vm2956, %v2940
        %2959 = vst.msk [vmem:[%s273 + $0x10] sm:$0xff] %vm2956, %v2941
        %2960 = vst.msk [vmem:[%s273 + $0x18] sm:$0xff] %vm2956, %v2942
        %2961 = vst.msk [vmem:[%s273 + $0x20] sm:$0xff] %vm2956, %v2943
        %2962 = vst.msk [vmem:[%s273 + $0x28] sm:$0xff] %vm2956, %v2944
        %2963 = vst.msk [vmem:[%s273 + $0x30] sm:$0xff] %vm2956, %v2945
        %2964 = vst.msk [vmem:[%s273 + $0x38] sm:$0xff] %vm2956, %v2946
        %2965 = vst.msk [vmem:[%s273 + $0x40] sm:$0xff] %vm2956, %v2947
        %2966 = vst.msk [vmem:[%s273 + $0x48] sm:$0xff] %vm2956, %v2948
        %2967 = vst.msk [vmem:[%s273 + $0x50] sm:$0xff] %vm2956, %v2949
        %2968 = vst.msk [vmem:[%s273 + $0x58] sm:$0xff] %vm2956, %v2950
        %2969 = vst.msk [vmem:[%s273 + $0x60] sm:$0xff] %vm2956, %v2951
        %2970 = vst.msk [vmem:[%s273 + $0x68] sm:$0xff] %vm2956, %v2952
        %2971 = vst.msk [vmem:[%s273 + $0x70] sm:$0xff] %vm2956, %v2953
        %2972 = vst.msk [vmem:[%s273 + $0x78] sm:$0xff] %vm2956, %v2954
        %2973 = vst.msk [vmem:[%s273 + $0x80] sm:$0xff] %vm2956, %v2955
        %s2974 = smul.u32 17, %s22
        %p2975 = scmp.lt.s32.totalorder %s2974, 33
        %s2976 = scalar_select %p2975, %s2974, 33
        %s2977 = smul.addr %s2976, 8
        %s2978 = scalar_lea.vmem %s5, %s2977
        // Predicated region
        $region53: #{tpu_custom_call.1} parent=39 // pred_check
          %p2979 = pneg %p150
        $region54: #{tpu_custom_call.1} parent=39 // pred_check_branch
          %2981 = sbr.rel (%p2979) target = $region56
        $region55: #{tpu_custom_call.1} parent=39 // pred_region
          %s2982 = smul.u32 17, %s22
        $region56: #{tpu_custom_call.1} parent=39 // pred_fallthru
          _
      $region40: #{tpu_custom_call.1} parent=5 // pred_fallthru
        _
      %p2983 = scmp.le.s32.totalorder 2, %s17
      // Predicated region
      $region57: #{tpu_custom_call.1} parent=5 // pred_check
        %p2984 = pneg %p2983
      $region58: #{tpu_custom_call.1} parent=5 // pred_check_branch
        %2986 = sbr.rel (%p2984) target = $region60
      $region59: #{tpu_custom_call.1} parent=5 // pred_region
        %s2987 = ssub.s32 %s17, 2
        // Predicated region
        $region61: #{tpu_custom_call.1} parent=59 // pred_check
          %p2988 = pneg %p156
        $region62: #{tpu_custom_call.1} parent=59 // pred_check_branch
          %2990 = sbr.rel (%p2988) target = $region64
        $region63: #{tpu_custom_call.1} parent=59 // pred_region
          %s2991 = smul.u32 17, %s23
          %p2992 = scmp.lt.s32.totalorder %s2991, 33
          %s2993 = scalar_select %p2992, %s2991, 33
          %s2994 = smul.addr %s2993, 8
          %s2995 = scalar_lea.vmem %s5, %s2994
        $region64: #{tpu_custom_call.1} parent=59 // pred_fallthru
          _
      $region60: #{tpu_custom_call.1} parent=5 // pred_fallthru
        _
    $region6: #{tpu_custom_call.1} parent=1 // loop_footer
      %s21 = sadd.s32 1, %s17
    $region7: #{tpu_custom_call.1} parent=1 // loop_footer_branch
      %16 = sbr.rel target = $region3
    $region8: #{tpu_custom_call.1} parent=1 // loop_exit
      _
    %2996 = vsyncpa [#allocation4], 1
    %s2997 = scalar_lea.sflag [#allocation4], 1
    %2998 = vsyncpa %s2997, 1
    %2999 = vsyncpa [#allocation6], 1

</llo_original>
